<compile_context>
chip_gen: v5e
topology: v5e:2x2
jax: 0.10.0
libtpu: 0.0.40
codegen_flags: <defaults>
</compile_context>

<pallas_src>
import functools

import jax
import jax.numpy as jnp
from jax.experimental import pallas as pl
from jax.experimental.pallas import tpu as pltpu


def _round_up(x, m):
    return (x + m - 1) // m * m


# ---------------------------------------------------------------------------
# Fused kernel: bp images (one grid step) -> full FCNHead forward.
# ---------------------------------------------------------------------------
def _fcn_head_kernel(x_ref, mask_ref, w0cx_ref, b0_ref, w1_ref, b1_ref,
                     wch_ref, bc_ref, ws_ref, bs_ref, o_ref, h_scr,
                     *, H, W, EXT, bp):
    """Activation layout: (C, bp*EXT) bf16. Image b occupies lanes [b*EXT, (b+1)*EXT):
    positions p = r*(W+2)+c hold padded pixel (r, c) for p < NE=(H+2)*(W+2); [NE, EXT) is a
    zero extension so the nine im2col tap slices never cross into the next image.  A 'same'
    3x3 conv on this layout puts output pixel (h, w) of image b at lane b*EXT + h*(W+2)+w
    (top-left corner); recenter() masks the garbage, shifts by +(W+3) into the persistent
    zero-bordered scratch, re-establishing the 1-pixel zero halo for the next layer."""
    Wp = W + 2
    NE = (H + 2) * Wp
    Nout = (bp - 1) * EXT + NE          # columns covering every image's valid region
    Wtot = bp * EXT
    C = w1_ref.shape[0]
    n_cls = ws_ref.shape[0]

    def im2col(a):
        # a: (Cin, Wtot) bf16 -> (9*Cin, Nout) bf16 patch matrix (fat matmul RHS).
        taps = [a[:, kh * Wp + kw: kh * Wp + kw + Nout]
                for kh in range(3) for kw in range(3)]
        return jnp.concatenate(taps, axis=0)

    mask = mask_ref[...]                # (1, Nout) bf16, 1 on each image's valid HxW block

    # Keep the never-overwritten halo/tail slivers of the persistent scratch zeroed
    # (cheap; re-done every step so it is correct under megacore "parallel" splitting).
    h_scr[:, pl.ds(0, Wp + 1)] = jnp.zeros((C, Wp + 1), jnp.bfloat16)
    h_scr[:, pl.ds(Wp + 1 + Nout, Wtot - Nout - Wp - 1)] = (
        jnp.zeros((C, Wtot - Nout - Wp - 1), jnp.bfloat16))

    def recenter(y):
        # y: (C, Nout) f32 pre-activation.  ReLU, cast bf16, mask garbage columns, and
        # store at +(Wp+1) into the zero-bordered scratch -> next layer's padded input.
        h_scr[:, pl.ds(Wp + 1, Nout)] = jnp.maximum(y, 0.0).astype(jnp.bfloat16) * mask

    # convs[0] and conv_cat's x-branch share im2col(x): one stacked matmul.
    px = im2col(x_ref[0])                                           # (9*cin_p, Nout) bf16
    y = jnp.dot(w0cx_ref[...], px, preferred_element_type=jnp.float32)   # (2C, Nout) f32
    hx_part = y[C:]                      # conv_cat x-partial (bias/ReLU applied later)
    recenter(y[:C] + b0_ref[...])        # convs[0]: +shift(BN) then ReLU

    # convs[1]
    y1 = jnp.dot(w1_ref[...], im2col(h_scr[...]),
                 preferred_element_type=jnp.float32) + b1_ref[...]
    recenter(y1)

    # conv_cat: conv over concat([x, h], channel) == wcx @ im2col(x) + wch @ im2col(h)
    y2 = (jnp.dot(wch_ref[...], im2col(h_scr[...]),
                  preferred_element_type=jnp.float32) + hx_part + bc_ref[...])
    h = jnp.maximum(y2, 0.0).astype(jnp.bfloat16)

    # Dropout2d in eval mode is identity.
    # TODO(synk): training-mode Dropout2d (random whole-channel zeroing) not implemented.
    # conv_seg: 1x1 conv + bias; pad to a multiple-of-128 width for a lane-dense store.
    seg = jnp.dot(ws_ref[...], h, preferred_element_type=jnp.float32) + bs_ref[...]
    seg_full = jnp.concatenate(
        [seg, jnp.zeros((n_cls, Wtot - Nout), jnp.float32)], axis=1)
    o_ref[0] = seg_full.astype(o_ref.dtype)


# ---------------------------------------------------------------------------
# Forward wrapper
# ---------------------------------------------------------------------------
def _pick_images_per_step(B):
    """Single-TC chips (v5e/v6e): fold the whole batch into one grid step (wider matmul N,
    no per-step overhead).  Dual-TC v7x: keep >= 2 parallel grid steps so both cores work."""
    try:
        kind = jax.devices()[0].device_kind.lower()
    except Exception:
        kind = ""
    dual_tc = ("v7" in kind) or ("7x" in kind)
    if dual_tc and B >= 2 and B % 2 == 0:
        return B // 2
    return max(B, 1)


def fcn_head_forward(x, params, images_per_step=None):
    """x: (B, Cin, H, W) f32 (NCHW, like PyTorch). Returns (B, num_classes, H, W) f32."""
    B, Cin, H, W = x.shape
    p = params
    C = p["w1"].shape[0]
    n_cls = p["ws"].shape[0]
    cin_p = p["w0cx"].shape[1] // 9

    Wp = W + 2
    NE = (H + 2) * Wp
    max_off = 2 * Wp + 2
    EXT = _round_up(NE + max_off, 128)

    bp = images_per_step or _pick_images_per_step(B)
    assert B % bp == 0, (B, bp)
    n_steps = B // bp
    Wtot = bp * EXT
    Nout = (bp - 1) * EXT + NE

    # Pad ONCE at head entry: zero channel-pad Cin -> cin_p, 1-pixel spatial halo, flatten
    # spatial, zero-extend each image to EXT lanes, cast bf16, then pack bp images per step
    # side-by-side along the lane axis.
    x_pad = jnp.pad(x, ((0, 0), (0, cin_p - Cin), (1, 1), (1, 1)))
    x_ext = jnp.pad(x_pad.reshape(B, cin_p, NE),
                    ((0, 0), (0, 0), (0, EXT - NE))).astype(jnp.bfloat16)
    x_fold = (x_ext.reshape(n_steps, bp, cin_p, EXT)
              .transpose(0, 2, 1, 3).reshape(n_steps, cin_p, Wtot))

    # Per-image valid-region mask (top-left HxW corner of each padded grid), bf16, tiled.
    mask_img = jnp.zeros((H + 2, Wp), jnp.bfloat16).at[:H, :W].set(1.0).reshape(1, NE)
    mask_img = jnp.pad(mask_img, ((0, 0), (0, EXT - NE)))
    mask = jnp.tile(mask_img, (1, bp))[:, :Nout]

    kernel = functools.partial(_fcn_head_kernel, H=H, W=W, EXT=EXT, bp=bp)

    # VMEM budget (bytes): 2x-buffered input/output blocks + persistent scratch + the two
    # im2col patch matrices + f32 activations; x2 headroom, clamped for v5e..v7x.
    weight_bytes = sum(int(v.size) * v.dtype.itemsize for v in p.values())
    est = (2 * cin_p * Wtot * 2 + 2 * n_cls * Wtot * 4 + C * Wtot * 2
           + (9 * cin_p + 9 * C) * Nout * 2 + (4 * C + n_cls) * Nout * 4 + weight_bytes)
    vmem_limit = min(64 << 20, max(32 << 20, 2 * est))

    flops = 2 * (2 * C * 9 * cin_p + 2 * C * 9 * C + n_cls * C) * Nout * n_steps
    bytes_accessed = (int(x_fold.size) * 2 + int(mask.size) * 2
                      + n_steps * n_cls * Wtot * 4 + weight_bytes)

    # NOTE(perf): for large H*W*C (esp. v7x: 64 MiB VMEM) add a row-tiled second "parallel"
    # grid axis with a 3-row input halo instead of whole-image-resident steps.
    out_flat = pl.pallas_call(
        kernel,
        out_shape=jax.ShapeDtypeStruct((n_steps, n_cls, Wtot), jnp.float32),
        grid_spec=pltpu.PrefetchScalarGridSpec(
            num_scalar_prefetch=0,
            grid=(n_steps,),
            in_specs=[
                pl.BlockSpec((1, cin_p, Wtot), lambda s: (s, 0, 0)),   # x (padded, folded)
                pl.BlockSpec((1, Nout), lambda s: (0, 0)),             # valid mask (bf16)
                pl.BlockSpec((2 * C, 9 * cin_p), lambda s: (0, 0)),    # [w0 ; wcx] stacked
                pl.BlockSpec((C, 1), lambda s: (0, 0)),                # b0
                pl.BlockSpec((C, 9 * C), lambda s: (0, 0)),            # w1
                pl.BlockSpec((C, 1), lambda s: (0, 0)),                # b1
                pl.BlockSpec((C, 9 * C), lambda s: (0, 0)),            # conv_cat, h part
                pl.BlockSpec((C, 1), lambda s: (0, 0)),                # bc
                pl.BlockSpec((n_cls, C), lambda s: (0, 0)),            # conv_seg weight
                pl.BlockSpec((n_cls, 1), lambda s: (0, 0)),            # conv_seg bias
            ],
            out_specs=pl.BlockSpec((1, n_cls, Wtot), lambda s: (s, 0, 0)),
            scratch_shapes=[pltpu.VMEM((C, Wtot), jnp.bfloat16)],      # persistent recenter
        ),
        compiler_params=pltpu.CompilerParams(
            dimension_semantics=("parallel",),
            vmem_limit_bytes=int(vmem_limit)),
        cost_estimate=pl.CostEstimate(flops=int(flops), transcendentals=0,
                                      bytes_accessed=int(bytes_accessed)),
    )(x_fold, mask, p["w0cx"], p["b0"], p["w1"], p["b1"],
      p["wch"], p["bc"], p["ws"], p["bs"])

    # Unfold batch, crop the valid HxW block (valid logits sit top-left in each EXT chunk).
    out = (out_flat.reshape(n_steps, n_cls, bp, EXT)
           .transpose(0, 2, 1, 3).reshape(B, n_cls, EXT))
    return out[:, :, :NE].reshape(B, n_cls, H + 2, Wp)[:, :, :H, :W]


# ---------------------------------------------------------------------------
# Parameter preparation (eval-mode BN folding + kernel weight layout)
# ---------------------------------------------------------------------------
def fold_bn(gamma, beta, mean, var, eps=1e-5):
    scale = gamma / jnp.sqrt(var + eps)
    shift = beta - mean * scale
    return scale, shift


def _prep_conv3x3(w_hwio, scale, shift, cin_pad):
    """Fold BN scale into a 3x3 conv weight, zero-pad input channels to cin_pad,
    reorder to the kernel's (Cout, 9*cin_pad) im2col layout, cast to bf16."""
    _, _, cin, cout = w_hwio.shape
    w = w_hwio * scale[None, None, None, :]
    w = jnp.pad(w, ((0, 0), (0, 0), (0, cin_pad - cin), (0, 0)))
    w_t = jnp.transpose(w, (3, 0, 1, 2)).reshape(cout, 9 * cin_pad)
    return w_t.astype(jnp.bfloat16), shift.reshape(cout, 1).astype(jnp.float32)


def prepare_params(raw):
    cin = raw["w0"].shape[2]
    cin_p = _round_up(cin, 8)
    s0, sh0 = fold_bn(*raw["bn0"])
    s1, sh1 = fold_bn(*raw["bn1"])
    sc, shc = fold_bn(*raw["bnc"])
    w0, b0 = _prep_conv3x3(raw["w0"], s0, sh0, cin_p)
    w1, b1 = _prep_conv3x3(raw["w1"], s1, sh1, raw["w1"].shape[2])
    # conv_cat weight split along input channels: [x | convs-output] (torch.cat order).
    wcx, bc = _prep_conv3x3(raw["wc"][:, :, :cin, :], sc, shc, cin_p)
    wch, _ = _prep_conv3x3(raw["wc"][:, :, cin:, :], sc, shc, raw["wc"].shape[2] - cin)
    return dict(
        # conv0 and conv_cat's x-branch share one stacked matmul LHS.
        w0cx=jnp.concatenate([w0, wcx], axis=0),     # (2C, 9*cin_p) bf16
        b0=b0, w1=w1, b1=b1, wch=wch, bc=bc,
        ws=raw["ws"].astype(jnp.bfloat16),
        bs=raw["bs"].reshape(-1, 1).astype(jnp.float32),
    )


def init_raw_params(key, in_channels, channels, num_classes):
    ks = jax.random.split(key, 7)

    def bn(k, c):
        kg, kb, km, kv = jax.random.split(k, 4)
        gamma = 1.0 + 0.1 * jax.random.normal(kg, (c,), jnp.float32)
        beta = 0.1 * jax.random.normal(kb, (c,), jnp.float32)
        mean = 0.1 * jax.random.normal(km, (c,), jnp.float32)
        var = jnp.abs(jax.random.normal(kv, (c,), jnp.float32)) + 0.5
        return gamma, beta, mean, var

    return dict(
        w0=0.05 * jax.random.normal(ks[0], (3, 3, in_channels, channels), jnp.float32),
        bn0=bn(ks[1], channels),
        w1=0.05 * jax.random.normal(ks[2], (3, 3, channels, channels), jnp.float32),
        bn1=bn(ks[3], channels),
        wc=0.05 * jax.random.normal(
            ks[4], (3, 3, in_channels + channels, channels), jnp.float32),
        bnc=bn(ks[5], channels),
        ws=0.01 * jax.random.normal(ks[6], (num_classes, channels), jnp.float32),
        bs=jnp.zeros((num_classes,), jnp.float32),
    )


if __name__ == "__main__":
    B, C_in, H, W = 2, 4, 16, 16        # small shapes consistent with the module
    channels, num_classes = 32, 8

    key = jax.random.PRNGKey(0)
    k_x, k_p = jax.random.split(key)
    x = jax.random.normal(k_x, (B, C_in, H, W), jnp.float32)     # NCHW, like PyTorch

    params = prepare_params(init_raw_params(k_p, C_in, channels, num_classes))

    out = jax.jit(fcn_head_forward)(x, params)
    out = jax.block_until_ready(out)
    assert out.shape == (B, num_classes, H, W), out.shape
    assert bool(jnp.all(jnp.isfinite(out)))
    print("KERNEL_OK")
</pallas_src>

<mosaic_0001>
module attributes {stable_mosaic.version = 11 : i64} {
  func.func @_fcn_head_kernel(%arg0: i32, %arg1: memref<1x8x768xbf16, #tpu.memory_space<vmem>>, %arg2: memref<1x708xbf16, #tpu.memory_space<vmem>>, %arg3: memref<64x72xbf16, #tpu.memory_space<vmem>>, %arg4: memref<32x1xf32, #tpu.memory_space<vmem>>, %arg5: memref<32x288xbf16, #tpu.memory_space<vmem>>, %arg6: memref<32x1xf32, #tpu.memory_space<vmem>>, %arg7: memref<32x288xbf16, #tpu.memory_space<vmem>>, %arg8: memref<32x1xf32, #tpu.memory_space<vmem>>, %arg9: memref<8x32xbf16, #tpu.memory_space<vmem>>, %arg10: memref<8x1xf32, #tpu.memory_space<vmem>>, %arg11: memref<1x8x768xf32, #tpu.memory_space<vmem>>, %arg12: memref<32x768xbf16, #tpu.memory_space<vmem>>) attributes {dimension_semantics = [#tpu.dimension_semantics<parallel>], iteration_bounds = array<i64: 1>, scalar_prefetch = 0 : i64, scratch_operands = 1 : i64, tpu.core_type = #tpu.core_type<tc>, window_params = [{transform_indices = @transform_0, window_bounds = array<i64: 1, 8, 768>}, {pipeline_mode = #tpu.pipeline_mode<synchronous>, transform_indices = @transform_1, window_bounds = array<i64: 1, 708>}, {pipeline_mode = #tpu.pipeline_mode<synchronous>, transform_indices = @transform_2, window_bounds = array<i64: 64, 72>}, {pipeline_mode = #tpu.pipeline_mode<synchronous>, transform_indices = @transform_3, window_bounds = array<i64: 32, 1>}, {pipeline_mode = #tpu.pipeline_mode<synchronous>, transform_indices = @transform_4, window_bounds = array<i64: 32, 288>}, {pipeline_mode = #tpu.pipeline_mode<synchronous>, transform_indices = @transform_5, window_bounds = array<i64: 32, 1>}, {pipeline_mode = #tpu.pipeline_mode<synchronous>, transform_indices = @transform_6, window_bounds = array<i64: 32, 288>}, {pipeline_mode = #tpu.pipeline_mode<synchronous>, transform_indices = @transform_7, window_bounds = array<i64: 32, 1>}, {pipeline_mode = #tpu.pipeline_mode<synchronous>, transform_indices = @transform_8, window_bounds = array<i64: 8, 32>}, {pipeline_mode = #tpu.pipeline_mode<synchronous>, transform_indices = @transform_9, window_bounds = array<i64: 8, 1>}, {transform_indices = @transform_10, window_bounds = array<i64: 1, 8, 768>}]} {
    %c0 = arith.constant 0 : index
    %c0_0 = arith.constant 0 : index
    %0 = vector.load %arg2[%c0, %c0_0] : memref<1x708xbf16, #tpu.memory_space<vmem>>, vector<1x708xbf16>
    %cst = arith.constant 0.000000e+00 : bf16
    %1 = vector.broadcast %cst : bf16 to vector<32x19xbf16>
    %c0_1 = arith.constant 0 : index
    %c0_2 = arith.constant 0 : index
    %2 = vector.load %arg12[%c0_1, %c0_2] : memref<32x768xbf16, #tpu.memory_space<vmem>>, vector<32x19xbf16>
    tpu.vector_store %arg12[%c0_1, %c0_2], %1 {strides = array<i32>} : memref<32x768xbf16, #tpu.memory_space<vmem>>, vector<32x19xbf16>,
    %cst_3 = arith.constant 0.000000e+00 : bf16
    %3 = vector.broadcast %cst_3 : bf16 to vector<32x41xbf16>
    %c0_4 = arith.constant 0 : index
    %c727 = arith.constant 727 : index
    %4 = vector.load %arg12[%c0_4, %c727] : memref<32x768xbf16, #tpu.memory_space<vmem>>, vector<32x41xbf16>
    tpu.vector_store %arg12[%c0_4, %c727], %3 {strides = array<i32>} : memref<32x768xbf16, #tpu.memory_space<vmem>>, vector<32x41xbf16>,
    %c0_5 = arith.constant 0 : index
    %c0_6 = arith.constant 0 : index
    %c0_7 = arith.constant 0 : index
    %5 = vector.load %arg1[%c0_5, %c0_6, %c0_7] : memref<1x8x768xbf16, #tpu.memory_space<vmem>>, vector<1x8x768xbf16>
    %6 = vector.shape_cast %5 : vector<1x8x768xbf16> to vector<8x768xbf16>
    %7 = vector.extract_strided_slice %6 {offsets = [0, 0], sizes = [8, 708], strides = [1, 1]} : vector<8x768xbf16> to vector<8x708xbf16>
    %8 = vector.extract_strided_slice %6 {offsets = [0, 1], sizes = [8, 708], strides = [1, 1]} : vector<8x768xbf16> to vector<8x708xbf16>
    %9 = vector.extract_strided_slice %6 {offsets = [0, 2], sizes = [8, 708], strides = [1, 1]} : vector<8x768xbf16> to vector<8x708xbf16>
    %10 = vector.extract_strided_slice %6 {offsets = [0, 18], sizes = [8, 708], strides = [1, 1]} : vector<8x768xbf16> to vector<8x708xbf16>
    %11 = vector.extract_strided_slice %6 {offsets = [0, 19], sizes = [8, 708], strides = [1, 1]} : vector<8x768xbf16> to vector<8x708xbf16>
    %12 = vector.extract_strided_slice %6 {offsets = [0, 20], sizes = [8, 708], strides = [1, 1]} : vector<8x768xbf16> to vector<8x708xbf16>
    %13 = vector.extract_strided_slice %6 {offsets = [0, 36], sizes = [8, 708], strides = [1, 1]} : vector<8x768xbf16> to vector<8x708xbf16>
    %14 = vector.extract_strided_slice %6 {offsets = [0, 37], sizes = [8, 708], strides = [1, 1]} : vector<8x768xbf16> to vector<8x708xbf16>
    %15 = vector.extract_strided_slice %6 {offsets = [0, 38], sizes = [8, 708], strides = [1, 1]} : vector<8x768xbf16> to vector<8x708xbf16>
    %16 = tpu.concatenate %7, %8, %9, %10, %11, %12, %13, %14, %15 in 0 : vector<8x708xbf16>, vector<8x708xbf16>, vector<8x708xbf16>, vector<8x708xbf16>, vector<8x708xbf16>, vector<8x708xbf16>, vector<8x708xbf16>, vector<8x708xbf16>, vector<8x708xbf16> -> vector<72x708xbf16>
    %c0_8 = arith.constant 0 : index
    %c0_9 = arith.constant 0 : index
    %17 = vector.load %arg3[%c0_8, %c0_9] : memref<64x72xbf16, #tpu.memory_space<vmem>>, vector<64x72xbf16>
    %cst_10 = arith.constant dense<0.000000e+00> : vector<64x708xf32>
    %18 = tpu.matmul %17, %16, %cst_10 {dimension_numbers = #tpu.dot_dimension_numbers<[1], [0], [0], [1], [0, 0, 1, 1], [], []>} : vector<64x72xbf16>, vector<72x708xbf16>, vector<64x708xf32> -> vector<64x708xf32>
    %19 = vector.extract_strided_slice %18 {offsets = [32, 0], sizes = [32, 708], strides = [1, 1]} : vector<64x708xf32> to vector<32x708xf32>
    %20 = vector.extract_strided_slice %18 {offsets = [0, 0], sizes = [32, 708], strides = [1, 1]} : vector<64x708xf32> to vector<32x708xf32>
    %c0_11 = arith.constant 0 : index
    %c0_12 = arith.constant 0 : index
    %21 = vector.load %arg4[%c0_11, %c0_12] : memref<32x1xf32, #tpu.memory_space<vmem>>, vector<32x1xf32>
    %22 = vector.broadcast %21 : vector<32x1xf32> to vector<32x708xf32>
    %23 = arith.addf %20, %22 : vector<32x708xf32>
    %cst_13 = arith.constant 0.000000e+00 : f32
    %24 = vector.broadcast %cst_13 : f32 to vector<32x708xf32>
    %25 = arith.maximumf %23, %24 : vector<32x708xf32>
    %26 = arith.truncf %25 : vector<32x708xf32> to vector<32x708xbf16>
    %27 = vector.broadcast %0 : vector<1x708xbf16> to vector<32x708xbf16>
    %28 = arith.mulf %26, %27 : vector<32x708xbf16>
    %c0_14 = arith.constant 0 : index
    %c19 = arith.constant 19 : index
    %29 = vector.load %arg12[%c0_14, %c19] : memref<32x768xbf16, #tpu.memory_space<vmem>>, vector<32x708xbf16>
    tpu.vector_store %arg12[%c0_14, %c19], %28 {strides = array<i32>} : memref<32x768xbf16, #tpu.memory_space<vmem>>, vector<32x708xbf16>,
    %c0_15 = arith.constant 0 : index
    %c0_16 = arith.constant 0 : index
    %30 = vector.load %arg5[%c0_15, %c0_16] : memref<32x288xbf16, #tpu.memory_space<vmem>>, vector<32x288xbf16>
    %c0_17 = arith.constant 0 : index
    %c0_18 = arith.constant 0 : index
    %31 = vector.load %arg12[%c0_17, %c0_18] : memref<32x768xbf16, #tpu.memory_space<vmem>>, vector<32x768xbf16>
    %32 = vector.extract_strided_slice %31 {offsets = [0, 0], sizes = [32, 708], strides = [1, 1]} : vector<32x768xbf16> to vector<32x708xbf16>
    %33 = vector.extract_strided_slice %31 {offsets = [0, 1], sizes = [32, 708], strides = [1, 1]} : vector<32x768xbf16> to vector<32x708xbf16>
    %34 = vector.extract_strided_slice %31 {offsets = [0, 2], sizes = [32, 708], strides = [1, 1]} : vector<32x768xbf16> to vector<32x708xbf16>
    %35 = vector.extract_strided_slice %31 {offsets = [0, 18], sizes = [32, 708], strides = [1, 1]} : vector<32x768xbf16> to vector<32x708xbf16>
    %36 = vector.extract_strided_slice %31 {offsets = [0, 19], sizes = [32, 708], strides = [1, 1]} : vector<32x768xbf16> to vector<32x708xbf16>
    %37 = vector.extract_strided_slice %31 {offsets = [0, 20], sizes = [32, 708], strides = [1, 1]} : vector<32x768xbf16> to vector<32x708xbf16>
    %38 = vector.extract_strided_slice %31 {offsets = [0, 36], sizes = [32, 708], strides = [1, 1]} : vector<32x768xbf16> to vector<32x708xbf16>
    %39 = vector.extract_strided_slice %31 {offsets = [0, 37], sizes = [32, 708], strides = [1, 1]} : vector<32x768xbf16> to vector<32x708xbf16>
    %40 = vector.extract_strided_slice %31 {offsets = [0, 38], sizes = [32, 708], strides = [1, 1]} : vector<32x768xbf16> to vector<32x708xbf16>
    %41 = tpu.concatenate %32, %33, %34, %35, %36, %37, %38, %39, %40 in 0 : vector<32x708xbf16>, vector<32x708xbf16>, vector<32x708xbf16>, vector<32x708xbf16>, vector<32x708xbf16>, vector<32x708xbf16>, vector<32x708xbf16>, vector<32x708xbf16>, vector<32x708xbf16> -> vector<288x708xbf16>
    %cst_19 = arith.constant dense<0.000000e+00> : vector<32x708xf32>
    %42 = tpu.matmul %30, %41, %cst_19 {dimension_numbers = #tpu.dot_dimension_numbers<[1], [0], [0], [1], [0, 0, 1, 1], [], []>} : vector<32x288xbf16>, vector<288x708xbf16>, vector<32x708xf32> -> vector<32x708xf32>
    %c0_20 = arith.constant 0 : index
    %c0_21 = arith.constant 0 : index
    %43 = vector.load %arg6[%c0_20, %c0_21] : memref<32x1xf32, #tpu.memory_space<vmem>>, vector<32x1xf32>
    %44 = vector.broadcast %43 : vector<32x1xf32> to vector<32x708xf32>
    %45 = arith.addf %42, %44 : vector<32x708xf32>
    %cst_22 = arith.constant 0.000000e+00 : f32
    %46 = vector.broadcast %cst_22 : f32 to vector<32x708xf32>
    %47 = arith.maximumf %45, %46 : vector<32x708xf32>
    %48 = arith.truncf %47 : vector<32x708xf32> to vector<32x708xbf16>
    %49 = vector.broadcast %0 : vector<1x708xbf16> to vector<32x708xbf16>
    %50 = arith.mulf %48, %49 : vector<32x708xbf16>
    %c0_23 = arith.constant 0 : index
    %c19_24 = arith.constant 19 : index
    %51 = vector.load %arg12[%c0_23, %c19_24] : memref<32x768xbf16, #tpu.memory_space<vmem>>, vector<32x708xbf16>
    tpu.vector_store %arg12[%c0_23, %c19_24], %50 {strides = array<i32>} : memref<32x768xbf16, #tpu.memory_space<vmem>>, vector<32x708xbf16>,
    %c0_25 = arith.constant 0 : index
    %c0_26 = arith.constant 0 : index
    %52 = vector.load %arg7[%c0_25, %c0_26] : memref<32x288xbf16, #tpu.memory_space<vmem>>, vector<32x288xbf16>
    %c0_27 = arith.constant 0 : index
    %c0_28 = arith.constant 0 : index
    %53 = vector.load %arg12[%c0_27, %c0_28] : memref<32x768xbf16, #tpu.memory_space<vmem>>, vector<32x768xbf16>
    %54 = vector.extract_strided_slice %53 {offsets = [0, 0], sizes = [32, 708], strides = [1, 1]} : vector<32x768xbf16> to vector<32x708xbf16>
    %55 = vector.extract_strided_slice %53 {offsets = [0, 1], sizes = [32, 708], strides = [1, 1]} : vector<32x768xbf16> to vector<32x708xbf16>
    %56 = vector.extract_strided_slice %53 {offsets = [0, 2], sizes = [32, 708], strides = [1, 1]} : vector<32x768xbf16> to vector<32x708xbf16>
    %57 = vector.extract_strided_slice %53 {offsets = [0, 18], sizes = [32, 708], strides = [1, 1]} : vector<32x768xbf16> to vector<32x708xbf16>
    %58 = vector.extract_strided_slice %53 {offsets = [0, 19], sizes = [32, 708], strides = [1, 1]} : vector<32x768xbf16> to vector<32x708xbf16>
    %59 = vector.extract_strided_slice %53 {offsets = [0, 20], sizes = [32, 708], strides = [1, 1]} : vector<32x768xbf16> to vector<32x708xbf16>
    %60 = vector.extract_strided_slice %53 {offsets = [0, 36], sizes = [32, 708], strides = [1, 1]} : vector<32x768xbf16> to vector<32x708xbf16>
    %61 = vector.extract_strided_slice %53 {offsets = [0, 37], sizes = [32, 708], strides = [1, 1]} : vector<32x768xbf16> to vector<32x708xbf16>
    %62 = vector.extract_strided_slice %53 {offsets = [0, 38], sizes = [32, 708], strides = [1, 1]} : vector<32x768xbf16> to vector<32x708xbf16>
    %63 = tpu.concatenate %54, %55, %56, %57, %58, %59, %60, %61, %62 in 0 : vector<32x708xbf16>, vector<32x708xbf16>, vector<32x708xbf16>, vector<32x708xbf16>, vector<32x708xbf16>, vector<32x708xbf16>, vector<32x708xbf16>, vector<32x708xbf16>, vector<32x708xbf16> -> vector<288x708xbf16>
    %cst_29 = arith.constant dense<0.000000e+00> : vector<32x708xf32>
    %64 = tpu.matmul %52, %63, %cst_29 {dimension_numbers = #tpu.dot_dimension_numbers<[1], [0], [0], [1], [0, 0, 1, 1], [], []>} : vector<32x288xbf16>, vector<288x708xbf16>, vector<32x708xf32> -> vector<32x708xf32>
    %65 = arith.addf %64, %19 : vector<32x708xf32>
    %c0_30 = arith.constant 0 : index
    %c0_31 = arith.constant 0 : index
    %66 = vector.load %arg8[%c0_30, %c0_31] : memref<32x1xf32, #tpu.memory_space<vmem>>, vector<32x1xf32>
    %67 = vector.broadcast %66 : vector<32x1xf32> to vector<32x708xf32>
    %68 = arith.addf %65, %67 : vector<32x708xf32>
    %cst_32 = arith.constant 0.000000e+00 : f32
    %69 = vector.broadcast %cst_32 : f32 to vector<32x708xf32>
    %70 = arith.maximumf %68, %69 : vector<32x708xf32>
    %71 = arith.truncf %70 : vector<32x708xf32> to vector<32x708xbf16>
    %c0_33 = arith.constant 0 : index
    %c0_34 = arith.constant 0 : index
    %72 = vector.load %arg9[%c0_33, %c0_34] : memref<8x32xbf16, #tpu.memory_space<vmem>>, vector<8x32xbf16>
    %cst_35 = arith.constant dense<0.000000e+00> : vector<8x708xf32>
    %73 = tpu.matmul %72, %71, %cst_35 {dimension_numbers = #tpu.dot_dimension_numbers<[1], [0], [0], [1], [0, 0, 1, 1], [], []>} : vector<8x32xbf16>, vector<32x708xbf16>, vector<8x708xf32> -> vector<8x708xf32>
    %c0_36 = arith.constant 0 : index
    %c0_37 = arith.constant 0 : index
    %74 = vector.load %arg10[%c0_36, %c0_37] : memref<8x1xf32, #tpu.memory_space<vmem>>, vector<8x1xf32>
    %75 = vector.broadcast %74 : vector<8x1xf32> to vector<8x708xf32>
    %76 = arith.addf %73, %75 : vector<8x708xf32>
    %cst_38 = arith.constant 0.000000e+00 : f32
    %77 = vector.broadcast %cst_38 : f32 to vector<8x60xf32>
    %78 = tpu.concatenate %76, %77 in 1 : vector<8x708xf32>, vector<8x60xf32> -> vector<8x768xf32>
    %c0_39 = arith.constant 0 : index
    %c0_40 = arith.constant 0 : index
    %c0_41 = arith.constant 0 : index
    %79 = vector.load %arg11[%c0_39, %c0_40, %c0_41] : memref<1x8x768xf32, #tpu.memory_space<vmem>>, vector<1x8x768xf32>
    %80 = vector.shape_cast %79 : vector<1x8x768xf32> to vector<8x768xf32>
    %81 = vector.shape_cast %78 : vector<8x768xf32> to vector<1x8x768xf32>
    tpu.vector_store %arg11[%c0_39, %c0_40, %c0_41], %81 {strides = array<i32>} : memref<1x8x768xf32, #tpu.memory_space<vmem>>, vector<1x8x768xf32>,
    return
  }
  func.func @transform_0(%arg0: i32) -> (i32, i32, i32) {
    %c0_i32 = arith.constant 0 : i32
    %c0_i32_0 = arith.constant 0 : i32
    %c0_i32_1 = arith.constant 0 : i32
    return %arg0, %c0_i32, %c0_i32_0 : i32, i32, i32
  }
  func.func @transform_1(%arg0: i32) -> (i32, i32) {
    %c0_i32 = arith.constant 0 : i32
    %c0_i32_0 = arith.constant 0 : i32
    %c0_i32_1 = arith.constant 0 : i32
    return %c0_i32, %c0_i32_0 : i32, i32
  }
  func.func @transform_2(%arg0: i32) -> (i32, i32) {
    %c0_i32 = arith.constant 0 : i32
    %c0_i32_0 = arith.constant 0 : i32
    %c0_i32_1 = arith.constant 0 : i32
    return %c0_i32, %c0_i32_0 : i32, i32
  }
  func.func @transform_3(%arg0: i32) -> (i32, i32) {
    %c0_i32 = arith.constant 0 : i32
    %c0_i32_0 = arith.constant 0 : i32
    %c0_i32_1 = arith.constant 0 : i32
    return %c0_i32, %c0_i32_0 : i32, i32
  }
  func.func @transform_4(%arg0: i32) -> (i32, i32) {
    %c0_i32 = arith.constant 0 : i32
    %c0_i32_0 = arith.constant 0 : i32
    %c0_i32_1 = arith.constant 0 : i32
    return %c0_i32, %c0_i32_0 : i32, i32
  }
  func.func @transform_5(%arg0: i32) -> (i32, i32) {
    %c0_i32 = arith.constant 0 : i32
    %c0_i32_0 = arith.constant 0 : i32
    %c0_i32_1 = arith.constant 0 : i32
    return %c0_i32, %c0_i32_0 : i32, i32
  }
  func.func @transform_6(%arg0: i32) -> (i32, i32) {
    %c0_i32 = arith.constant 0 : i32
    %c0_i32_0 = arith.constant 0 : i32
    %c0_i32_1 = arith.constant 0 : i32
    return %c0_i32, %c0_i32_0 : i32, i32
  }
  func.func @transform_7(%arg0: i32) -> (i32, i32) {
    %c0_i32 = arith.constant 0 : i32
    %c0_i32_0 = arith.constant 0 : i32
    %c0_i32_1 = arith.constant 0 : i32
    return %c0_i32, %c0_i32_0 : i32, i32
  }
  func.func @transform_8(%arg0: i32) -> (i32, i32) {
    %c0_i32 = arith.constant 0 : i32
    %c0_i32_0 = arith.constant 0 : i32
    %c0_i32_1 = arith.constant 0 : i32
    return %c0_i32, %c0_i32_0 : i32, i32
  }
  func.func @transform_9(%arg0: i32) -> (i32, i32) {
    %c0_i32 = arith.constant 0 : i32
    %c0_i32_0 = arith.constant 0 : i32
    %c0_i32_1 = arith.constant 0 : i32
    return %c0_i32, %c0_i32_0 : i32, i32
  }
  func.func @transform_10(%arg0: i32) -> (i32, i32, i32) {
    %c0_i32 = arith.constant 0 : i32
    %c0_i32_0 = arith.constant 0 : i32
    %c0_i32_1 = arith.constant 0 : i32
    return %arg0, %c0_i32, %c0_i32_0 : i32, i32, i32
  }
}

</mosaic_0001>

<llo_original>
// kernel: fcn_head_forward.1
$region0: #{fcn_head_forward.1}
  #allocation0 [shape = 'u32[]', space=smem, size = 0x4, offset = 0x4, fixed_abs, tag = 'smem constant byte address 0x4 - core index']
  #allocation1 [shape = 'u32[72,128]{1,0:T(1,128)}', space=vmem, size = 0x9000, scoped, tag = 'internal scratch']
  #allocation2 [shape = 'bf16[32,768]{1,0:T(8,128)(2,1)}', space=vmem, size = 0xc000, scoped, tag = 'scratch operand']
  %s0 = inlined_call_operand.vmem [shape: bf16[1,8,768], index: 0, kind: input, shape index: {}]
  %s1 = inlined_call_operand.vmem [shape: bf16[1,708], index: 1, kind: input, shape index: {}]
  %s2 = inlined_call_operand.vmem [shape: bf16[64,72], index: 2, kind: input, shape index: {}]
  %s3 = inlined_call_operand.vmem [shape: f32[32,1], index: 3, kind: input, shape index: {}]
  %s4 = inlined_call_operand.vmem [shape: bf16[32,288], index: 4, kind: input, shape index: {}]
  %s5 = inlined_call_operand.vmem [shape: f32[32,1], index: 5, kind: input, shape index: {}]
  %s6 = inlined_call_operand.vmem [shape: bf16[32,288], index: 6, kind: input, shape index: {}]
  %s7 = inlined_call_operand.vmem [shape: f32[32,1], index: 7, kind: input, shape index: {}]
  %s8 = inlined_call_operand.vmem [shape: bf16[8,32], index: 8, kind: input, shape index: {}]
  %s9 = inlined_call_operand.vmem [shape: f32[8,1], index: 9, kind: input, shape index: {}]
  %s10 = inlined_call_operand.vmem [shape: f32[1,8,768], index: 10, kind: output, shape index: {}]
  %s11 = sld [smem:[#allocation0]]
  $region50: #{fcn_head_forward.1} parent=0
    _
  %s13 = ssub.s32 1, %s11
  %s14 = scalar_select 0, %s13, %s11
  // Predicated region
  $region2: #{fcn_head_forward.1} parent=0 // pred_check
    _
  $region3: #{fcn_head_forward.1} parent=0 // pred_check_branch
    %16 = sbr.rel (0) target = $region5
  $region4: #{fcn_head_forward.1} parent=0 // pred_region
    _
  $region5: #{fcn_head_forward.1} parent=0 // pred_fallthru
    _
  // Predicated region
  $region6: #{fcn_head_forward.1} parent=0 // pred_check
    _
  $region7: #{fcn_head_forward.1} parent=0 // pred_check_branch
    %18 = sbr.rel (0) target = $region9
  $region8: #{fcn_head_forward.1} parent=0 // pred_region
    _
  $region9: #{fcn_head_forward.1} parent=0 // pred_fallthru
    _
  // Predicated region
  $region10: #{fcn_head_forward.1} parent=0 // pred_check
    _
  $region11: #{fcn_head_forward.1} parent=0 // pred_check_branch
    %20 = sbr.rel (0) target = $region13
  $region12: #{fcn_head_forward.1} parent=0 // pred_region
    _
  $region13: #{fcn_head_forward.1} parent=0 // pred_fallthru
    _
  // Predicated region
  $region14: #{fcn_head_forward.1} parent=0 // pred_check
    _
  $region15: #{fcn_head_forward.1} parent=0 // pred_check_branch
    %22 = sbr.rel (0) target = $region17
  $region16: #{fcn_head_forward.1} parent=0 // pred_region
    _
  $region17: #{fcn_head_forward.1} parent=0 // pred_fallthru
    _
  // Predicated region
  $region18: #{fcn_head_forward.1} parent=0 // pred_check
    _
  $region19: #{fcn_head_forward.1} parent=0 // pred_check_branch
    %24 = sbr.rel (0) target = $region21
  $region20: #{fcn_head_forward.1} parent=0 // pred_region
    _
  $region21: #{fcn_head_forward.1} parent=0 // pred_fallthru
    _
  // Predicated region
  $region22: #{fcn_head_forward.1} parent=0 // pred_check
    _
  $region23: #{fcn_head_forward.1} parent=0 // pred_check_branch
    %26 = sbr.rel (0) target = $region25
  $region24: #{fcn_head_forward.1} parent=0 // pred_region
    _
  $region25: #{fcn_head_forward.1} parent=0 // pred_fallthru
    _
  // Predicated region
  $region26: #{fcn_head_forward.1} parent=0 // pred_check
    _
  $region27: #{fcn_head_forward.1} parent=0 // pred_check_branch
    %28 = sbr.rel (0) target = $region29
  $region28: #{fcn_head_forward.1} parent=0 // pred_region
    _
  $region29: #{fcn_head_forward.1} parent=0 // pred_fallthru
    _
  // Predicated region
  $region30: #{fcn_head_forward.1} parent=0 // pred_check
    _
  $region31: #{fcn_head_forward.1} parent=0 // pred_check_branch
    %30 = sbr.rel (0) target = $region33
  $region32: #{fcn_head_forward.1} parent=0 // pred_region
    _
  $region33: #{fcn_head_forward.1} parent=0 // pred_fallthru
    _
  // Predicated region
  $region34: #{fcn_head_forward.1} parent=0 // pred_check
    _
  $region35: #{fcn_head_forward.1} parent=0 // pred_check_branch
    %32 = sbr.rel (0) target = $region37
  $region36: #{fcn_head_forward.1} parent=0 // pred_region
    _
  $region37: #{fcn_head_forward.1} parent=0 // pred_fallthru
    _
  // Predicated region
  $region38: #{fcn_head_forward.1} parent=0 // pred_check
    _
  $region39: #{fcn_head_forward.1} parent=0 // pred_check_branch
    %34 = sbr.rel (0) target = $region41
  $region40: #{fcn_head_forward.1} parent=0 // pred_region
    _
  $region41: #{fcn_head_forward.1} parent=0 // pred_fallthru
    _
  %v36 = vld [vmem:[%s1] sm:$0x3f]
  %vm37 = vcmask 150528
  %38 = vst.msk [vmem:[#allocation2] sm:$0xf] %vm37, 0
  %39 = vst.msk [vmem:[#allocation2 + $0x18] sm:$0xf] %vm37, 0
  %40 = vst.msk [vmem:[#allocation2 + $0x30] sm:$0xf] %vm37, 0
  %41 = vst.msk [vmem:[#allocation2 + $0x48] sm:$0xf] %vm37, 0
  %vm42 = vcmask 1044152
  %43 = vst.msk [vmem:[#allocation2 + $0x14] sm:$0xf] %vm42, 0
  %44 = vst.msk [vmem:[#allocation2 + $0x2c] sm:$0xf] %vm42, 0
  %45 = vst.msk [vmem:[#allocation2 + $0x44] sm:$0xf] %vm42, 0
  %46 = vst.msk [vmem:[#allocation2 + $0x5c] sm:$0xf] %vm42, 0
  %v47 = vld [vmem:[%s0] sm:$0xff]
  %v48 = vld [vmem:[%s0 + $0x8] sm:$0xff]
  %v49 = vld [vmem:[%s0 + $0x10] sm:$0xff]
  %v53 = vunpack.c.l.b16 %v47
  %v54 = vunpack.c.h.b16 %v47
  %v55 = vunpack.c.l.b16 %v48
  %v56 = vunpack.c.h.b16 %v48
  %v57 = vunpack.c.l.b16 %v49
  %v58 = vunpack.c.h.b16 %v49
  %v59 = vpack.c.b16 %v53, %v53
  %v60 = vpack.c.b16 %v54, %v54
  %v61 = vpack.c.b16 %v55, %v55
  %v62 = vpack.c.b16 %v56, %v56
  %v63 = vpack.c.b16 %v57, %v57
  %v64 = vpack.c.b16 %v58, %v58
  %65 = vrot.lane.b32.xlu0 %v59, 127
  %v66 = vpop.permute.xlu0 %65
  %67 = vrot.lane.b32.xlu0 %v60, 127
  %v68 = vpop.permute.xlu0 %67
  %69 = vrot.lane.b32.xlu0 %v61, 127
  %v70 = vpop.permute.xlu0 %69
  %71 = vrot.lane.b32.xlu0 %v62, 127
  %v72 = vpop.permute.xlu0 %71
  %73 = vrot.lane.b32.xlu0 %v63, 127
  %v74 = vpop.permute.xlu0 %73
  %75 = vrot.lane.b32.xlu0 %v64, 127
  %v76 = vpop.permute.xlu0 %75
  %vm77 = vcmask 1039360
  %v78 = vsel %vm77, %v66, %v68
  %v79 = vsel %vm77, %v68, %v70
  %v80 = vsel %vm77, %v70, %v72
  %v81 = vsel %vm77, %v72, %v74
  %v82 = vsel %vm77, %v74, %v76
  %83 = vrot.lane.b32.xlu0 %v59, 126
  %v84 = vpop.permute.xlu0 %83
  %85 = vrot.lane.b32.xlu0 %v60, 126
  %v86 = vpop.permute.xlu0 %85
  %87 = vrot.lane.b32.xlu0 %v61, 126
  %v88 = vpop.permute.xlu0 %87
  %89 = vrot.lane.b32.xlu0 %v62, 126
  %v90 = vpop.permute.xlu0 %89
  %91 = vrot.lane.b32.xlu0 %v63, 126
  %v92 = vpop.permute.xlu0 %91
  %93 = vrot.lane.b32.xlu0 %v64, 126
  %v94 = vpop.permute.xlu0 %93
  %vm95 = vcmask 1031168
  %v96 = vsel %vm95, %v84, %v86
  %v97 = vsel %vm95, %v86, %v88
  %v98 = vsel %vm95, %v88, %v90
  %v99 = vsel %vm95, %v90, %v92
  %v100 = vsel %vm95, %v92, %v94
  %101 = vrot.lane.b32.xlu0 %v59, 110
  %v102 = vpop.permute.xlu0 %101
  %103 = vrot.lane.b32.xlu0 %v60, 110
  %v104 = vpop.permute.xlu0 %103
  %105 = vrot.lane.b32.xlu0 %v61, 110
  %v106 = vpop.permute.xlu0 %105
  %107 = vrot.lane.b32.xlu0 %v62, 110
  %v108 = vpop.permute.xlu0 %107
  %109 = vrot.lane.b32.xlu0 %v63, 110
  %v110 = vpop.permute.xlu0 %109
  %111 = vrot.lane.b32.xlu0 %v64, 110
  %v112 = vpop.permute.xlu0 %111
  %vm113 = vcmask 900096
  %v114 = vsel %vm113, %v102, %v104
  %v115 = vsel %vm113, %v104, %v106
  %v116 = vsel %vm113, %v106, %v108
  %v117 = vsel %vm113, %v108, %v110
  %v118 = vsel %vm113, %v110, %v112
  %119 = vrot.lane.b32.xlu0 %v59, 109
  %v120 = vpop.permute.xlu0 %119
  %121 = vrot.lane.b32.xlu0 %v60, 109
  %v122 = vpop.permute.xlu0 %121
  %123 = vrot.lane.b32.xlu0 %v61, 109
  %v124 = vpop.permute.xlu0 %123
  %125 = vrot.lane.b32.xlu0 %v62, 109
  %v126 = vpop.permute.xlu0 %125
  %127 = vrot.lane.b32.xlu0 %v63, 109
  %v128 = vpop.permute.xlu0 %127
  %129 = vrot.lane.b32.xlu0 %v64, 109
  %v130 = vpop.permute.xlu0 %129
  %vm131 = vcmask 891904
  %v132 = vsel %vm131, %v120, %v122
  %v133 = vsel %vm131, %v122, %v124
  %v134 = vsel %vm131, %v124, %v126
  %v135 = vsel %vm131, %v126, %v128
  %v136 = vsel %vm131, %v128, %v130
  %137 = vrot.lane.b32.xlu0 %v59, 108
  %v138 = vpop.permute.xlu0 %137
  %139 = vrot.lane.b32.xlu0 %v60, 108
  %v140 = vpop.permute.xlu0 %139
  %141 = vrot.lane.b32.xlu0 %v61, 108
  %v142 = vpop.permute.xlu0 %141
  %143 = vrot.lane.b32.xlu0 %v62, 108
  %v144 = vpop.permute.xlu0 %143
  %145 = vrot.lane.b32.xlu0 %v63, 108
  %v146 = vpop.permute.xlu0 %145
  %147 = vrot.lane.b32.xlu0 %v64, 108
  %v148 = vpop.permute.xlu0 %147
  %vm149 = vcmask 883712
  %v150 = vsel %vm149, %v138, %v140
  %v151 = vsel %vm149, %v140, %v142
  %v152 = vsel %vm149, %v142, %v144
  %v153 = vsel %vm149, %v144, %v146
  %v154 = vsel %vm149, %v146, %v148
  %155 = vrot.lane.b32.xlu0 %v59, 92
  %v156 = vpop.permute.xlu0 %155
  %157 = vrot.lane.b32.xlu0 %v60, 92
  %v158 = vpop.permute.xlu0 %157
  %159 = vrot.lane.b32.xlu0 %v61, 92
  %v160 = vpop.permute.xlu0 %159
  %161 = vrot.lane.b32.xlu0 %v62, 92
  %v162 = vpop.permute.xlu0 %161
  %163 = vrot.lane.b32.xlu0 %v63, 92
  %v164 = vpop.permute.xlu0 %163
  %165 = vrot.lane.b32.xlu0 %v64, 92
  %v166 = vpop.permute.xlu0 %165
  %vm167 = vcmask 752640
  %v168 = vsel %vm167, %v156, %v158
  %v169 = vsel %vm167, %v158, %v160
  %v170 = vsel %vm167, %v160, %v162
  %v171 = vsel %vm167, %v162, %v164
  %v172 = vsel %vm167, %v164, %v166
  %173 = vrot.lane.b32.xlu0 %v59, 91
  %v174 = vpop.permute.xlu0 %173
  %175 = vrot.lane.b32.xlu0 %v60, 91
  %v176 = vpop.permute.xlu0 %175
  %177 = vrot.lane.b32.xlu0 %v61, 91
  %v178 = vpop.permute.xlu0 %177
  %179 = vrot.lane.b32.xlu0 %v62, 91
  %v180 = vpop.permute.xlu0 %179
  %181 = vrot.lane.b32.xlu0 %v63, 91
  %v182 = vpop.permute.xlu0 %181
  %183 = vrot.lane.b32.xlu0 %v64, 91
  %v184 = vpop.permute.xlu0 %183
  %vm185 = vcmask 744448
  %v186 = vsel %vm185, %v174, %v176
  %v187 = vsel %vm185, %v176, %v178
  %v188 = vsel %vm185, %v178, %v180
  %v189 = vsel %vm185, %v180, %v182
  %v190 = vsel %vm185, %v182, %v184
  %191 = vrot.lane.b32.xlu0 %v59, 90
  %v192 = vpop.permute.xlu0 %191
  %193 = vrot.lane.b32.xlu0 %v60, 90
  %v194 = vpop.permute.xlu0 %193
  %195 = vrot.lane.b32.xlu0 %v61, 90
  %v196 = vpop.permute.xlu0 %195
  %197 = vrot.lane.b32.xlu0 %v62, 90
  %v198 = vpop.permute.xlu0 %197
  %199 = vrot.lane.b32.xlu0 %v63, 90
  %v200 = vpop.permute.xlu0 %199
  %201 = vrot.lane.b32.xlu0 %v64, 90
  %v202 = vpop.permute.xlu0 %201
  %vm203 = vcmask 736256
  %v204 = vsel %vm203, %v192, %v194
  %v205 = vsel %vm203, %v194, %v196
  %v206 = vsel %vm203, %v196, %v198
  %v207 = vsel %vm203, %v198, %v200
  %v208 = vsel %vm203, %v200, %v202
  %vm209 = vcmask 1043456
  %v212 = vsel %vm209, %v59, %v78
  %v216 = vsel %vm209, %v60, %v79
  %v220 = vsel %vm209, %v61, %v80
  %v224 = vsel %vm209, %v62, %v81
  %v228 = vsel %vm209, %v63, %v82
  %v232 = vsel %vm209, %v64, %v76
  %v236 = vsel %vm209, %v96, %v114
  %v240 = vsel %vm209, %v97, %v115
  %v244 = vsel %vm209, %v98, %v116
  %v248 = vsel %vm209, %v99, %v117
  %v252 = vsel %vm209, %v100, %v118
  %v256 = vsel %vm209, %v94, %v112
  %v260 = vsel %vm209, %v132, %v150
  %v264 = vsel %vm209, %v133, %v151
  %v268 = vsel %vm209, %v134, %v152
  %v272 = vsel %vm209, %v135, %v153
  %v276 = vsel %vm209, %v136, %v154
  %v280 = vsel %vm209, %v130, %v148
  %v284 = vsel %vm209, %v168, %v186
  %v288 = vsel %vm209, %v169, %v187
  %v292 = vsel %vm209, %v170, %v188
  %v296 = vsel %vm209, %v171, %v189
  %v300 = vsel %vm209, %v172, %v190
  %v304 = vsel %vm209, %v166, %v184
  %v306 = vld [vmem:[%s2] sm:$0xf]
  %v307 = vld [vmem:[%s2 + $0x4] sm:$0xf]
  %v308 = vld [vmem:[%s2 + $0x8] sm:$0xf]
  %v309 = vld [vmem:[%s2 + $0xc] sm:$0xf]
  %v310 = vld [vmem:[%s2 + $0x10] sm:$0xf]
  %v311 = vld [vmem:[%s2 + $0x14] sm:$0xf]
  %v312 = vld [vmem:[%s2 + $0x18] sm:$0xf]
  %v313 = vld [vmem:[%s2 + $0x1c] sm:$0xf]
  %v322 = vunpack.c.l.b16 %v306
  %v323 = vunpack.c.l.b16 %v307
  %v324 = vunpack.c.l.b16 %v308
  %v325 = vunpack.c.l.b16 %v309
  %v326 = vunpack.c.l.b16 %v310
  %v327 = vunpack.c.l.b16 %v311
  %v328 = vunpack.c.l.b16 %v312
  %v329 = vunpack.c.l.b16 %v313
  %v330 = vpack.c.b16 %v323, %v322
  %v331 = vpack.c.b16 %v325, %v324
  %v332 = vpack.c.b16 %v327, %v326
  %v333 = vpack.c.b16 %v329, %v328
  %vm334 = vcmask 588800
  %v336 = vsel %vm334, %v330, 0
  %v339 = vsel %vm334, %v331, 0
  %v342 = vsel %vm334, %v332, 0
  %v345 = vsel %vm334, %v333, 0
  %v348 = vsel %vm209, %v204, 0
  %v351 = vsel %vm209, %v205, 0
  %v354 = vsel %vm209, %v206, 0
  %v357 = vsel %vm209, %v207, 0
  %v360 = vsel %vm209, %v208, 0
  %v363 = vsel %vm209, %v202, 0
  %365 = vmatpush.bf16.msra.mxu0 0
  %366 = vmatpush.bf16.msra.mxu0 0
  %367 = vmatpush.bf16.msra.mxu0 0
  %368 = vmatpush.bf16.msra.mxu0 %v348
  %369 = vmatpush.bf16.msra.mxu0 %v284
  %370 = vmatpush.bf16.msra.mxu0 %v260
  %371 = vmatpush.bf16.msra.mxu0 %v236
  %372 = vmatpush.bf16.msra.mxu0 %v212
  %373 = vmatmul.bf16.gmra.mxu0 %v336
  %v374 = vpop.f32.mrf.mxu0
  %v375 = vadd.f32 0.0, %v374
  %v376 = vpop.f32.mrf.mxu0
  %v377 = vadd.f32 0.0, %v376
  %378 = vmatmul.bf16.gmra.mxu0 %v339
  %v379 = vpop.f32.mrf.mxu0
  %v380 = vadd.f32 0.0, %v379
  %v381 = vpop.f32.mrf.mxu0
  %v382 = vadd.f32 0.0, %v381
  %383 = vmatmul.bf16.gmra.mxu0 %v342
  %v384 = vpop.f32.mrf.mxu0
  %v385 = vadd.f32 0.0, %v384
  %v386 = vpop.f32.mrf.mxu0
  %v387 = vadd.f32 0.0, %v386
  %388 = vmatmul.bf16.gmra.mxu0 %v345
  %v389 = vpop.f32.mrf.mxu0
  %v390 = vadd.f32 0.0, %v389
  %v391 = vpop.f32.mrf.mxu0
  %v392 = vadd.f32 0.0, %v391
  %393 = vdwg.mxu0
  %394 = vmatpush.bf16.msra.mxu0 0
  %395 = vmatpush.bf16.msra.mxu0 0
  %396 = vmatpush.bf16.msra.mxu0 0
  %397 = vmatpush.bf16.msra.mxu0 %v351
  %398 = vmatpush.bf16.msra.mxu0 %v288
  %399 = vmatpush.bf16.msra.mxu0 %v264
  %400 = vmatpush.bf16.msra.mxu0 %v240
  %401 = vmatpush.bf16.msra.mxu0 %v216
  %402 = vmatmul.bf16.gmra.mxu0 %v336
  %v403 = vpop.f32.mrf.mxu0
  %v404 = vadd.f32 0.0, %v403
  %v405 = vpop.f32.mrf.mxu0
  %v406 = vadd.f32 0.0, %v405
  %407 = vmatmul.bf16.gmra.mxu0 %v339
  %v408 = vpop.f32.mrf.mxu0
  %v409 = vadd.f32 0.0, %v408
  %v410 = vpop.f32.mrf.mxu0
  %v411 = vadd.f32 0.0, %v410
  %412 = vmatmul.bf16.gmra.mxu0 %v342
  %v413 = vpop.f32.mrf.mxu0
  %v414 = vadd.f32 0.0, %v413
  %v415 = vpop.f32.mrf.mxu0
  %v416 = vadd.f32 0.0, %v415
  %417 = vmatmul.bf16.gmra.mxu0 %v345
  %v418 = vpop.f32.mrf.mxu0
  %v419 = vadd.f32 0.0, %v418
  %v420 = vpop.f32.mrf.mxu0
  %v421 = vadd.f32 0.0, %v420
  %422 = vdwg.mxu0
  %423 = vmatpush.bf16.msra.mxu0 0
  %424 = vmatpush.bf16.msra.mxu0 0
  %425 = vmatpush.bf16.msra.mxu0 0
  %426 = vmatpush.bf16.msra.mxu0 %v354
  %427 = vmatpush.bf16.msra.mxu0 %v292
  %428 = vmatpush.bf16.msra.mxu0 %v268
  %429 = vmatpush.bf16.msra.mxu0 %v244
  %430 = vmatpush.bf16.msra.mxu0 %v220
  %431 = vmatmul.bf16.gmra.mxu0 %v336
  %v432 = vpop.f32.mrf.mxu0
  %v433 = vadd.f32 0.0, %v432
  %v434 = vpop.f32.mrf.mxu0
  %v435 = vadd.f32 0.0, %v434
  %436 = vmatmul.bf16.gmra.mxu0 %v339
  %v437 = vpop.f32.mrf.mxu0
  %v438 = vadd.f32 0.0, %v437
  %v439 = vpop.f32.mrf.mxu0
  %v440 = vadd.f32 0.0, %v439
  %441 = vmatmul.bf16.gmra.mxu0 %v342
  %v442 = vpop.f32.mrf.mxu0
  %v443 = vadd.f32 0.0, %v442
  %v444 = vpop.f32.mrf.mxu0
  %v445 = vadd.f32 0.0, %v444
  %446 = vmatmul.bf16.gmra.mxu0 %v345
  %v447 = vpop.f32.mrf.mxu0
  %v448 = vadd.f32 0.0, %v447
  %v449 = vpop.f32.mrf.mxu0
  %v450 = vadd.f32 0.0, %v449
  %451 = vdwg.mxu0
  %452 = vmatpush.bf16.msra.mxu0 0
  %453 = vmatpush.bf16.msra.mxu0 0
  %454 = vmatpush.bf16.msra.mxu0 0
  %455 = vmatpush.bf16.msra.mxu0 %v357
  %456 = vmatpush.bf16.msra.mxu0 %v296
  %457 = vmatpush.bf16.msra.mxu0 %v272
  %458 = vmatpush.bf16.msra.mxu0 %v248
  %459 = vmatpush.bf16.msra.mxu0 %v224
  %460 = vmatmul.bf16.gmra.mxu0 %v336
  %v461 = vpop.f32.mrf.mxu0
  %v462 = vadd.f32 0.0, %v461
  %v463 = vpop.f32.mrf.mxu0
  %v464 = vadd.f32 0.0, %v463
  %465 = vmatmul.bf16.gmra.mxu0 %v339
  %v466 = vpop.f32.mrf.mxu0
  %v467 = vadd.f32 0.0, %v466
  %v468 = vpop.f32.mrf.mxu0
  %v469 = vadd.f32 0.0, %v468
  %470 = vmatmul.bf16.gmra.mxu0 %v342
  %v471 = vpop.f32.mrf.mxu0
  %v472 = vadd.f32 0.0, %v471
  %v473 = vpop.f32.mrf.mxu0
  %v474 = vadd.f32 0.0, %v473
  %475 = vmatmul.bf16.gmra.mxu0 %v345
  %v476 = vpop.f32.mrf.mxu0
  %v477 = vadd.f32 0.0, %v476
  %v478 = vpop.f32.mrf.mxu0
  %v479 = vadd.f32 0.0, %v478
  %480 = vdwg.mxu0
  %481 = vmatpush.bf16.msra.mxu0 0
  %482 = vmatpush.bf16.msra.mxu0 0
  %483 = vmatpush.bf16.msra.mxu0 0
  %484 = vmatpush.bf16.msra.mxu0 %v360
  %485 = vmatpush.bf16.msra.mxu0 %v300
  %486 = vmatpush.bf16.msra.mxu0 %v276
  %487 = vmatpush.bf16.msra.mxu0 %v252
  %488 = vmatpush.bf16.msra.mxu0 %v228
  %489 = vmatmul.bf16.gmra.mxu0 %v336
  %v490 = vpop.f32.mrf.mxu0
  %v491 = vadd.f32 0.0, %v490
  %v492 = vpop.f32.mrf.mxu0
  %v493 = vadd.f32 0.0, %v492
  %494 = vmatmul.bf16.gmra.mxu0 %v339
  %v495 = vpop.f32.mrf.mxu0
  %v496 = vadd.f32 0.0, %v495
  %v497 = vpop.f32.mrf.mxu0
  %v498 = vadd.f32 0.0, %v497
  %499 = vmatmul.bf16.gmra.mxu0 %v342
  %v500 = vpop.f32.mrf.mxu0
  %v501 = vadd.f32 0.0, %v500
  %v502 = vpop.f32.mrf.mxu0
  %v503 = vadd.f32 0.0, %v502
  %504 = vmatmul.bf16.gmra.mxu0 %v345
  %v505 = vpop.f32.mrf.mxu0
  %v506 = vadd.f32 0.0, %v505
  %v507 = vpop.f32.mrf.mxu0
  %v508 = vadd.f32 0.0, %v507
  %509 = vdwg.mxu0
  %510 = vmatpush.bf16.msra.mxu0 0
  %511 = vmatpush.bf16.msra.mxu0 0
  %512 = vmatpush.bf16.msra.mxu0 0
  %513 = vmatpush.bf16.msra.mxu0 %v363
  %514 = vmatpush.bf16.msra.mxu0 %v304
  %515 = vmatpush.bf16.msra.mxu0 %v280
  %516 = vmatpush.bf16.msra.mxu0 %v256
  %517 = vmatpush.bf16.msra.mxu0 %v232
  %518 = vmatmul.bf16.gmra.mxu0 %v336
  %v519 = vpop.f32.mrf.mxu0
  %v520 = vadd.f32 0.0, %v519
  %v521 = vpop.f32.mrf.mxu0
  %v522 = vadd.f32 0.0, %v521
  %523 = vmatmul.bf16.gmra.mxu0 %v339
  %v524 = vpop.f32.mrf.mxu0
  %v525 = vadd.f32 0.0, %v524
  %v526 = vpop.f32.mrf.mxu0
  %v527 = vadd.f32 0.0, %v526
  %528 = vmatmul.bf16.gmra.mxu0 %v342
  %v529 = vpop.f32.mrf.mxu0
  %v530 = vadd.f32 0.0, %v529
  %v531 = vpop.f32.mrf.mxu0
  %v532 = vadd.f32 0.0, %v531
  %533 = vmatmul.bf16.gmra.mxu0 %v345
  %v534 = vpop.f32.mrf.mxu0
  %v535 = vadd.f32 0.0, %v534
  %v536 = vpop.f32.mrf.mxu0
  %v537 = vadd.f32 0.0, %v536
  %538 = vdwg.mxu0
  %v539 = vld [vmem:[%s3] sm:$0xff]
  %v540 = vld [vmem:[%s3 + $0x8] sm:$0xff]
  %v541 = vld [vmem:[%s3 + $0x10] sm:$0xff]
  %v542 = vld [vmem:[%s3 + $0x18] sm:$0xff]
  %544 = vset.pattern.permute.xlu0 0
  %545 = vperm.xlu0 %544, %v539
  %v546 = vpop.permute.xlu0 %545
  %549 = vset.pattern.permute.xlu0 0
  %550 = vperm.xlu0 %549, %v540
  %v551 = vpop.permute.xlu0 %550
  %554 = vset.pattern.permute.xlu0 0
  %555 = vperm.xlu0 %554, %v541
  %v556 = vpop.permute.xlu0 %555
  %559 = vset.pattern.permute.xlu0 0
  %560 = vperm.xlu0 %559, %v542
  %v561 = vpop.permute.xlu0 %560
  %v563 = vadd.f32 %v375, %v546
  %v564 = vadd.f32 %v404, %v546
  %v565 = vadd.f32 %v433, %v546
  %v566 = vadd.f32 %v462, %v546
  %v567 = vadd.f32 %v491, %v546
  %v568 = vadd.f32 %v520, %v546
  %v569 = vadd.f32 %v377, %v551
  %v570 = vadd.f32 %v406, %v551
  %v571 = vadd.f32 %v435, %v551
  %v572 = vadd.f32 %v464, %v551
  %v573 = vadd.f32 %v493, %v551
  %v574 = vadd.f32 %v522, %v551
  %v575 = vadd.f32 %v380, %v556
  %v576 = vadd.f32 %v409, %v556
  %v577 = vadd.f32 %v438, %v556
  %v578 = vadd.f32 %v467, %v556
  %v579 = vadd.f32 %v496, %v556
  %v580 = vadd.f32 %v525, %v556
  %v581 = vadd.f32 %v382, %v561
  %v582 = vadd.f32 %v411, %v561
  %v583 = vadd.f32 %v440, %v561
  %v584 = vadd.f32 %v469, %v561
  %v585 = vadd.f32 %v498, %v561
  %v586 = vadd.f32 %v527, %v561
  %v587 = vmax.f32 %v563, 0.0
  %v588 = vmax.f32 %v564, 0.0
  %v589 = vmax.f32 %v565, 0.0
  %v590 = vmax.f32 %v566, 0.0
  %v591 = vmax.f32 %v567, 0.0
  %v592 = vmax.f32 %v568, 0.0
  %v593 = vmax.f32 %v569, 0.0
  %v594 = vmax.f32 %v570, 0.0
  %v595 = vmax.f32 %v571, 0.0
  %v596 = vmax.f32 %v572, 0.0
  %v597 = vmax.f32 %v573, 0.0
  %v598 = vmax.f32 %v574, 0.0
  %v599 = vmax.f32 %v575, 0.0
  %v600 = vmax.f32 %v576, 0.0
  %v601 = vmax.f32 %v577, 0.0
  %v602 = vmax.f32 %v578, 0.0
  %v603 = vmax.f32 %v579, 0.0
  %v604 = vmax.f32 %v580, 0.0
  %v605 = vmax.f32 %v581, 0.0
  %v606 = vmax.f32 %v582, 0.0
  %v607 = vmax.f32 %v583, 0.0
  %v608 = vmax.f32 %v584, 0.0
  %v609 = vmax.f32 %v585, 0.0
  %v610 = vmax.f32 %v586, 0.0
  %v611 = vpack.c.bf16 %v588, %v587
  %v612 = vpack.c.bf16 %v590, %v589
  %v613 = vpack.c.bf16 %v592, %v591
  %v614 = vpack.c.bf16 %v594, %v593
  %v615 = vpack.c.bf16 %v596, %v595
  %v616 = vpack.c.bf16 %v598, %v597
  %v617 = vpack.c.bf16 %v600, %v599
  %v618 = vpack.c.bf16 %v602, %v601
  %v619 = vpack.c.bf16 %v604, %v603
  %v620 = vpack.c.bf16 %v606, %v605
  %v621 = vpack.c.bf16 %v608, %v607
  %v622 = vpack.c.bf16 %v610, %v609
  %624 = vst [vmem:[#allocation1] ss:$9 sm:$0xff] %v36
  %v625 = vld [vmem:[#allocation1] sm:$0xff]
  %v626 = vld [vmem:[#allocation1 + $0x9] sm:$0xff]
  %v627 = vld [vmem:[#allocation1 + $0x12] sm:$0xff]
  %v628 = vld [vmem:[#allocation1 + $0x1b] sm:$0xff]
  %v629 = vld [vmem:[#allocation1 + $0x24] sm:$0xff]
  %v630 = vld [vmem:[#allocation1 + $0x2d] sm:$0xff]
  %v631 = vpack.i.b16 %v625, %v625
  %v633 = vperm.slane %v631, 0
  %v634 = vpack.i.b16 %v626, %v626
  %v636 = vperm.slane %v634, 0
  %v637 = vpack.i.b16 %v627, %v627
  %v639 = vperm.slane %v637, 0
  %v640 = vpack.i.b16 %v628, %v628
  %v642 = vperm.slane %v640, 0
  %v643 = vpack.i.b16 %v629, %v629
  %v645 = vperm.slane %v643, 0
  %v646 = vpack.i.b16 %v630, %v630
  %v648 = vperm.slane %v646, 0
  %v649 = vunpack.c.l.bf16 %v611
  %v650 = vunpack.c.h.bf16 %v611
  %v651 = vunpack.c.l.bf16 %v612
  %v652 = vunpack.c.h.bf16 %v612
  %v653 = vunpack.c.l.bf16 %v613
  %v654 = vunpack.c.h.bf16 %v613
  %v655 = vunpack.c.l.bf16 %v614
  %v656 = vunpack.c.h.bf16 %v614
  %v657 = vunpack.c.l.bf16 %v615
  %v658 = vunpack.c.h.bf16 %v615
  %v659 = vunpack.c.l.bf16 %v616
  %v660 = vunpack.c.h.bf16 %v616
  %v661 = vunpack.c.l.bf16 %v617
  %v662 = vunpack.c.h.bf16 %v617
  %v663 = vunpack.c.l.bf16 %v618
  %v664 = vunpack.c.h.bf16 %v618
  %v665 = vunpack.c.l.bf16 %v619
  %v666 = vunpack.c.h.bf16 %v619
  %v667 = vunpack.c.l.bf16 %v620
  %v668 = vunpack.c.h.bf16 %v620
  %v669 = vunpack.c.l.bf16 %v621
  %v670 = vunpack.c.h.bf16 %v621
  %v671 = vunpack.c.l.bf16 %v622
  %v672 = vunpack.c.h.bf16 %v622
  %v673 = vunpack.c.l.bf16 %v633
  %v674 = vunpack.c.l.bf16 %v636
  %v675 = vunpack.c.l.bf16 %v639
  %v676 = vunpack.c.l.bf16 %v642
  %v677 = vunpack.c.l.bf16 %v645
  %v678 = vunpack.c.l.bf16 %v648
  %v679 = vmul.f32 %v649, %v673
  %v680 = vmul.f32 %v650, %v674
  %v681 = vmul.f32 %v651, %v675
  %v682 = vmul.f32 %v652, %v676
  %v683 = vmul.f32 %v653, %v677
  %v684 = vmul.f32 %v654, %v678
  %v685 = vmul.f32 %v655, %v673
  %v686 = vmul.f32 %v656, %v674
  %v687 = vmul.f32 %v657, %v675
  %v688 = vmul.f32 %v658, %v676
  %v689 = vmul.f32 %v659, %v677
  %v690 = vmul.f32 %v660, %v678
  %v691 = vmul.f32 %v661, %v673
  %v692 = vmul.f32 %v662, %v674
  %v693 = vmul.f32 %v663, %v675
  %v694 = vmul.f32 %v664, %v676
  %v695 = vmul.f32 %v665, %v677
  %v696 = vmul.f32 %v666, %v678
  %v697 = vmul.f32 %v667, %v673
  %v698 = vmul.f32 %v668, %v674
  %v699 = vmul.f32 %v669, %v675
  %v700 = vmul.f32 %v670, %v676
  %v701 = vmul.f32 %v671, %v677
  %v702 = vmul.f32 %v672, %v678
  %v703 = vpack.c.bf16 %v680, %v679
  %v704 = vpack.c.bf16 %v682, %v681
  %v705 = vpack.c.bf16 %v684, %v683
  %v706 = vpack.c.bf16 %v686, %v685
  %v707 = vpack.c.bf16 %v688, %v687
  %v708 = vpack.c.bf16 %v690, %v689
  %v709 = vpack.c.bf16 %v692, %v691
  %v710 = vpack.c.bf16 %v694, %v693
  %v711 = vpack.c.bf16 %v696, %v695
  %v712 = vpack.c.bf16 %v698, %v697
  %v713 = vpack.c.bf16 %v700, %v699
  %v714 = vpack.c.bf16 %v702, %v701
  %727 = vrot.lane.b32.xlu0 %v703, 19
  %v728 = vpop.permute.xlu0 %727
  %729 = vrot.lane.b32.xlu0 %v704, 19
  %v730 = vpop.permute.xlu0 %729
  %731 = vrot.lane.b32.xlu0 %v705, 19
  %v732 = vpop.permute.xlu0 %731
  %733 = vrot.lane.b32.xlu0 %v706, 19
  %v734 = vpop.permute.xlu0 %733
  %735 = vrot.lane.b32.xlu0 %v707, 19
  %v736 = vpop.permute.xlu0 %735
  %737 = vrot.lane.b32.xlu0 %v708, 19
  %v738 = vpop.permute.xlu0 %737
  %739 = vrot.lane.b32.xlu0 %v709, 19
  %v740 = vpop.permute.xlu0 %739
  %741 = vrot.lane.b32.xlu0 %v710, 19
  %v742 = vpop.permute.xlu0 %741
  %743 = vrot.lane.b32.xlu0 %v711, 19
  %v744 = vpop.permute.xlu0 %743
  %745 = vrot.lane.b32.xlu0 %v712, 19
  %v746 = vpop.permute.xlu0 %745
  %747 = vrot.lane.b32.xlu0 %v713, 19
  %v748 = vpop.permute.xlu0 %747
  %749 = vrot.lane.b32.xlu0 %v714, 19
  %v750 = vpop.permute.xlu0 %749
  %v751 = vrot.slane %v728, 4
  %v752 = vrot.slane %v730, 4
  %v753 = vrot.slane %v732, 4
  %v754 = vrot.slane %v734, 4
  %v755 = vrot.slane %v736, 4
  %v756 = vrot.slane %v738, 4
  %v757 = vrot.slane %v740, 4
  %v758 = vrot.slane %v742, 4
  %v759 = vrot.slane %v744, 4
  %v760 = vrot.slane %v746, 4
  %v761 = vrot.slane %v748, 4
  %v762 = vrot.slane %v750, 4
  %vm763 = vcmask 154624
  %v764 = vsel %vm763, %v751, %v728
  %vm765 = vcmask 1043456
  %v766 = vsel %vm765, %v751, %v752
  %v767 = vsel %vm763, %v766, %v730
  %v768 = vsel %vm765, %v752, %v753
  %v769 = vsel %vm763, %v768, %v732
  %v770 = vsel %vm763, %v754, %v734
  %v771 = vsel %vm765, %v754, %v755
  %v772 = vsel %vm763, %v771, %v736
  %v773 = vsel %vm765, %v755, %v756
  %v774 = vsel %vm763, %v773, %v738
  %v775 = vsel %vm763, %v757, %v740
  %v776 = vsel %vm765, %v757, %v758
  %v777 = vsel %vm763, %v776, %v742
  %v778 = vsel %vm765, %v758, %v759
  %v779 = vsel %vm763, %v778, %v744
  %v780 = vsel %vm763, %v760, %v746
  %v781 = vsel %vm765, %v760, %v761
  %v782 = vsel %vm763, %v781, %v748
  %v783 = vsel %vm765, %v761, %v762
  %v784 = vsel %vm763, %v783, %v750
  %vm797 = vcmask 1043608
  %vm798 = vcmask 1047556
  %vm799 = vmor %vm798, %vm797
  %800 = vst.msk [vmem:[#allocation2] sm:$0xff] %vm799, %v764
  %801 = vst [vmem:[#allocation2 + $0x8] sm:$0xff] %v767
  %vm802 = vcmask 711684
  %vm803 = vmor %vm802, %vm209
  %804 = vst.msk [vmem:[#allocation2 + $0x10] sm:$0xff] %vm803, %v769
  %805 = vst.msk [vmem:[#allocation2 + $0x18] sm:$0xff] %vm799, %v770
  %806 = vst [vmem:[#allocation2 + $0x20] sm:$0xff] %v772
  %807 = vst.msk [vmem:[#allocation2 + $0x28] sm:$0xff] %vm803, %v774
  %808 = vst.msk [vmem:[#allocation2 + $0x30] sm:$0xff] %vm799, %v775
  %809 = vst [vmem:[#allocation2 + $0x38] sm:$0xff] %v777
  %810 = vst.msk [vmem:[#allocation2 + $0x40] sm:$0xff] %vm803, %v779
  %811 = vst.msk [vmem:[#allocation2 + $0x48] sm:$0xff] %vm799, %v780
  %812 = vst [vmem:[#allocation2 + $0x50] sm:$0xff] %v782
  %813 = vst.msk [vmem:[#allocation2 + $0x58] sm:$0xff] %vm803, %v784
  %v814 = vld [vmem:[%s4] sm:$0xff]
  %v815 = vld [vmem:[%s4 + $0x8] sm:$0xf]
  %v816 = vld [vmem:[%s4 + $0xc] sm:$0xff]
  %v817 = vld [vmem:[%s4 + $0x14] sm:$0xf]
  %v818 = vld [vmem:[%s4 + $0x18] sm:$0xff]
  %v819 = vld [vmem:[%s4 + $0x20] sm:$0xf]
  %v820 = vld [vmem:[%s4 + $0x24] sm:$0xff]
  %v821 = vld [vmem:[%s4 + $0x2c] sm:$0xf]
  %v822 = vld [vmem:[#allocation2] sm:$0xff]
  %v823 = vld [vmem:[#allocation2 + $0x8] sm:$0xff]
  %v824 = vld [vmem:[#allocation2 + $0x10] sm:$0xff]
  %v825 = vld [vmem:[#allocation2 + $0x18] sm:$0xff]
  %v826 = vld [vmem:[#allocation2 + $0x20] sm:$0xff]
  %v827 = vld [vmem:[#allocation2 + $0x28] sm:$0xff]
  %v828 = vld [vmem:[#allocation2 + $0x30] sm:$0xff]
  %v829 = vld [vmem:[#allocation2 + $0x38] sm:$0xff]
  %v830 = vld [vmem:[#allocation2 + $0x40] sm:$0xff]
  %v831 = vld [vmem:[#allocation2 + $0x48] sm:$0xff]
  %v832 = vld [vmem:[#allocation2 + $0x50] sm:$0xff]
  %v833 = vld [vmem:[#allocation2 + $0x58] sm:$0xff]
  %v846 = vunpack.c.l.b16 %v822
  %v847 = vunpack.c.h.b16 %v822
  %v848 = vunpack.c.l.b16 %v823
  %v849 = vunpack.c.h.b16 %v823
  %v850 = vunpack.c.l.b16 %v824
  %v851 = vunpack.c.h.b16 %v824
  %v852 = vunpack.c.l.b16 %v825
  %v853 = vunpack.c.h.b16 %v825
  %v854 = vunpack.c.l.b16 %v826
  %v855 = vunpack.c.h.b16 %v826
  %v856 = vunpack.c.l.b16 %v827
  %v857 = vunpack.c.h.b16 %v827
  %v858 = vunpack.c.l.b16 %v828
  %v859 = vunpack.c.h.b16 %v828
  %v860 = vunpack.c.l.b16 %v829
  %v861 = vunpack.c.h.b16 %v829
  %v862 = vunpack.c.l.b16 %v830
  %v863 = vunpack.c.h.b16 %v830
  %v864 = vunpack.c.l.b16 %v831
  %v865 = vunpack.c.h.b16 %v831
  %v866 = vunpack.c.l.b16 %v832
  %v867 = vunpack.c.h.b16 %v832
  %v868 = vunpack.c.l.b16 %v833
  %v869 = vunpack.c.h.b16 %v833
  %v870 = vpack.c.b16 %v852, %v846
  %v871 = vpack.c.b16 %v853, %v847
  %v872 = vpack.c.b16 %v854, %v848
  %v873 = vpack.c.b16 %v855, %v849
  %v874 = vpack.c.b16 %v856, %v850
  %v875 = vpack.c.b16 %v857, %v851
  %v876 = vpack.c.b16 %v864, %v858
  %v877 = vpack.c.b16 %v865, %v859
  %v878 = vpack.c.b16 %v866, %v860
  %v879 = vpack.c.b16 %v867, %v861
  %v880 = vpack.c.b16 %v868, %v862
  %v881 = vpack.c.b16 %v869, %v863
  %894 = vrot.lane.b32.xlu0 %v870, 127
  %v895 = vpop.permute.xlu0 %894
  %896 = vrot.lane.b32.xlu0 %v871, 127
  %v897 = vpop.permute.xlu0 %896
  %898 = vrot.lane.b32.xlu0 %v872, 127
  %v899 = vpop.permute.xlu0 %898
  %900 = vrot.lane.b32.xlu0 %v873, 127
  %v901 = vpop.permute.xlu0 %900
  %902 = vrot.lane.b32.xlu0 %v874, 127
  %v903 = vpop.permute.xlu0 %902
  %904 = vrot.lane.b32.xlu0 %v875, 127
  %v905 = vpop.permute.xlu0 %904
  %906 = vrot.lane.b32.xlu0 %v876, 127
  %v907 = vpop.permute.xlu0 %906
  %908 = vrot.lane.b32.xlu0 %v877, 127
  %v909 = vpop.permute.xlu0 %908
  %910 = vrot.lane.b32.xlu0 %v878, 127
  %v911 = vpop.permute.xlu0 %910
  %912 = vrot.lane.b32.xlu0 %v879, 127
  %v913 = vpop.permute.xlu0 %912
  %914 = vrot.lane.b32.xlu0 %v880, 127
  %v915 = vpop.permute.xlu0 %914
  %916 = vrot.lane.b32.xlu0 %v881, 127
  %v917 = vpop.permute.xlu0 %916
  %v918 = vsel %vm77, %v895, %v897
  %v919 = vsel %vm77, %v897, %v899
  %v920 = vsel %vm77, %v899, %v901
  %v921 = vsel %vm77, %v901, %v903
  %v922 = vsel %vm77, %v903, %v905
  %v923 = vsel %vm77, %v907, %v909
  %v924 = vsel %vm77, %v909, %v911
  %v925 = vsel %vm77, %v911, %v913
  %v926 = vsel %vm77, %v913, %v915
  %v927 = vsel %vm77, %v915, %v917
  %940 = vrot.lane.b32.xlu0 %v870, 126
  %v941 = vpop.permute.xlu0 %940
  %942 = vrot.lane.b32.xlu0 %v871, 126
  %v943 = vpop.permute.xlu0 %942
  %944 = vrot.lane.b32.xlu0 %v872, 126
  %v945 = vpop.permute.xlu0 %944
  %946 = vrot.lane.b32.xlu0 %v873, 126
  %v947 = vpop.permute.xlu0 %946
  %948 = vrot.lane.b32.xlu0 %v874, 126
  %v949 = vpop.permute.xlu0 %948
  %950 = vrot.lane.b32.xlu0 %v875, 126
  %v951 = vpop.permute.xlu0 %950
  %952 = vrot.lane.b32.xlu0 %v876, 126
  %v953 = vpop.permute.xlu0 %952
  %954 = vrot.lane.b32.xlu0 %v877, 126
  %v955 = vpop.permute.xlu0 %954
  %956 = vrot.lane.b32.xlu0 %v878, 126
  %v957 = vpop.permute.xlu0 %956
  %958 = vrot.lane.b32.xlu0 %v879, 126
  %v959 = vpop.permute.xlu0 %958
  %960 = vrot.lane.b32.xlu0 %v880, 126
  %v961 = vpop.permute.xlu0 %960
  %962 = vrot.lane.b32.xlu0 %v881, 126
  %v963 = vpop.permute.xlu0 %962
  %v964 = vsel %vm95, %v941, %v943
  %v965 = vsel %vm95, %v943, %v945
  %v966 = vsel %vm95, %v945, %v947
  %v967 = vsel %vm95, %v947, %v949
  %v968 = vsel %vm95, %v949, %v951
  %v969 = vsel %vm95, %v953, %v955
  %v970 = vsel %vm95, %v955, %v957
  %v971 = vsel %vm95, %v957, %v959
  %v972 = vsel %vm95, %v959, %v961
  %v973 = vsel %vm95, %v961, %v963
  %986 = vrot.lane.b32.xlu0 %v870, 110
  %v987 = vpop.permute.xlu0 %986
  %988 = vrot.lane.b32.xlu0 %v871, 110
  %v989 = vpop.permute.xlu0 %988
  %990 = vrot.lane.b32.xlu0 %v872, 110
  %v991 = vpop.permute.xlu0 %990
  %992 = vrot.lane.b32.xlu0 %v873, 110
  %v993 = vpop.permute.xlu0 %992
  %994 = vrot.lane.b32.xlu0 %v874, 110
  %v995 = vpop.permute.xlu0 %994
  %996 = vrot.lane.b32.xlu0 %v875, 110
  %v997 = vpop.permute.xlu0 %996
  %998 = vrot.lane.b32.xlu0 %v876, 110
  %v999 = vpop.permute.xlu0 %998
  %1000 = vrot.lane.b32.xlu0 %v877, 110
  %v1001 = vpop.permute.xlu0 %1000
  %1002 = vrot.lane.b32.xlu0 %v878, 110
  %v1003 = vpop.permute.xlu0 %1002
  %1004 = vrot.lane.b32.xlu0 %v879, 110
  %v1005 = vpop.permute.xlu0 %1004
  %1006 = vrot.lane.b32.xlu0 %v880, 110
  %v1007 = vpop.permute.xlu0 %1006
  %1008 = vrot.lane.b32.xlu0 %v881, 110
  %v1009 = vpop.permute.xlu0 %1008
  %v1010 = vsel %vm113, %v987, %v989
  %v1011 = vsel %vm113, %v989, %v991
  %v1012 = vsel %vm113, %v991, %v993
  %v1013 = vsel %vm113, %v993, %v995
  %v1014 = vsel %vm113, %v995, %v997
  %v1015 = vsel %vm113, %v999, %v1001
  %v1016 = vsel %vm113, %v1001, %v1003
  %v1017 = vsel %vm113, %v1003, %v1005
  %v1018 = vsel %vm113, %v1005, %v1007
  %v1019 = vsel %vm113, %v1007, %v1009
  %1032 = vrot.lane.b32.xlu0 %v870, 109
  %v1033 = vpop.permute.xlu0 %1032
  %1034 = vrot.lane.b32.xlu0 %v871, 109
  %v1035 = vpop.permute.xlu0 %1034
  %1036 = vrot.lane.b32.xlu0 %v872, 109
  %v1037 = vpop.permute.xlu0 %1036
  %1038 = vrot.lane.b32.xlu0 %v873, 109
  %v1039 = vpop.permute.xlu0 %1038
  %1040 = vrot.lane.b32.xlu0 %v874, 109
  %v1041 = vpop.permute.xlu0 %1040
  %1042 = vrot.lane.b32.xlu0 %v875, 109
  %v1043 = vpop.permute.xlu0 %1042
  %1044 = vrot.lane.b32.xlu0 %v876, 109
  %v1045 = vpop.permute.xlu0 %1044
  %1046 = vrot.lane.b32.xlu0 %v877, 109
  %v1047 = vpop.permute.xlu0 %1046
  %1048 = vrot.lane.b32.xlu0 %v878, 109
  %v1049 = vpop.permute.xlu0 %1048
  %1050 = vrot.lane.b32.xlu0 %v879, 109
  %v1051 = vpop.permute.xlu0 %1050
  %1052 = vrot.lane.b32.xlu0 %v880, 109
  %v1053 = vpop.permute.xlu0 %1052
  %1054 = vrot.lane.b32.xlu0 %v881, 109
  %v1055 = vpop.permute.xlu0 %1054
  %v1056 = vsel %vm131, %v1033, %v1035
  %v1057 = vsel %vm131, %v1035, %v1037
  %v1058 = vsel %vm131, %v1037, %v1039
  %v1059 = vsel %vm131, %v1039, %v1041
  %v1060 = vsel %vm131, %v1041, %v1043
  %v1061 = vsel %vm131, %v1045, %v1047
  %v1062 = vsel %vm131, %v1047, %v1049
  %v1063 = vsel %vm131, %v1049, %v1051
  %v1064 = vsel %vm131, %v1051, %v1053
  %v1065 = vsel %vm131, %v1053, %v1055
  %1078 = vrot.lane.b32.xlu0 %v870, 108
  %v1079 = vpop.permute.xlu0 %1078
  %1080 = vrot.lane.b32.xlu0 %v871, 108
  %v1081 = vpop.permute.xlu0 %1080
  %1082 = vrot.lane.b32.xlu0 %v872, 108
  %v1083 = vpop.permute.xlu0 %1082
  %1084 = vrot.lane.b32.xlu0 %v873, 108
  %v1085 = vpop.permute.xlu0 %1084
  %1086 = vrot.lane.b32.xlu0 %v874, 108
  %v1087 = vpop.permute.xlu0 %1086
  %1088 = vrot.lane.b32.xlu0 %v875, 108
  %v1089 = vpop.permute.xlu0 %1088
  %1090 = vrot.lane.b32.xlu0 %v876, 108
  %v1091 = vpop.permute.xlu0 %1090
  %1092 = vrot.lane.b32.xlu0 %v877, 108
  %v1093 = vpop.permute.xlu0 %1092
  %1094 = vrot.lane.b32.xlu0 %v878, 108
  %v1095 = vpop.permute.xlu0 %1094
  %1096 = vrot.lane.b32.xlu0 %v879, 108
  %v1097 = vpop.permute.xlu0 %1096
  %1098 = vrot.lane.b32.xlu0 %v880, 108
  %v1099 = vpop.permute.xlu0 %1098
  %1100 = vrot.lane.b32.xlu0 %v881, 108
  %v1101 = vpop.permute.xlu0 %1100
  %v1102 = vsel %vm149, %v1079, %v1081
  %v1103 = vsel %vm149, %v1081, %v1083
  %v1104 = vsel %vm149, %v1083, %v1085
  %v1105 = vsel %vm149, %v1085, %v1087
  %v1106 = vsel %vm149, %v1087, %v1089
  %v1107 = vsel %vm149, %v1091, %v1093
  %v1108 = vsel %vm149, %v1093, %v1095
  %v1109 = vsel %vm149, %v1095, %v1097
  %v1110 = vsel %vm149, %v1097, %v1099
  %v1111 = vsel %vm149, %v1099, %v1101
  %1124 = vrot.lane.b32.xlu0 %v870, 92
  %v1125 = vpop.permute.xlu0 %1124
  %1126 = vrot.lane.b32.xlu0 %v871, 92
  %v1127 = vpop.permute.xlu0 %1126
  %1128 = vrot.lane.b32.xlu0 %v872, 92
  %v1129 = vpop.permute.xlu0 %1128
  %1130 = vrot.lane.b32.xlu0 %v873, 92
  %v1131 = vpop.permute.xlu0 %1130
  %1132 = vrot.lane.b32.xlu0 %v874, 92
  %v1133 = vpop.permute.xlu0 %1132
  %1134 = vrot.lane.b32.xlu0 %v875, 92
  %v1135 = vpop.permute.xlu0 %1134
  %1136 = vrot.lane.b32.xlu0 %v876, 92
  %v1137 = vpop.permute.xlu0 %1136
  %1138 = vrot.lane.b32.xlu0 %v877, 92
  %v1139 = vpop.permute.xlu0 %1138
  %1140 = vrot.lane.b32.xlu0 %v878, 92
  %v1141 = vpop.permute.xlu0 %1140
  %1142 = vrot.lane.b32.xlu0 %v879, 92
  %v1143 = vpop.permute.xlu0 %1142
  %1144 = vrot.lane.b32.xlu0 %v880, 92
  %v1145 = vpop.permute.xlu0 %1144
  %1146 = vrot.lane.b32.xlu0 %v881, 92
  %v1147 = vpop.permute.xlu0 %1146
  %v1148 = vsel %vm167, %v1125, %v1127
  %v1149 = vsel %vm167, %v1127, %v1129
  %v1150 = vsel %vm167, %v1129, %v1131
  %v1151 = vsel %vm167, %v1131, %v1133
  %v1152 = vsel %vm167, %v1133, %v1135
  %v1153 = vsel %vm167, %v1137, %v1139
  %v1154 = vsel %vm167, %v1139, %v1141
  %v1155 = vsel %vm167, %v1141, %v1143
  %v1156 = vsel %vm167, %v1143, %v1145
  %v1157 = vsel %vm167, %v1145, %v1147
  %1170 = vrot.lane.b32.xlu0 %v870, 91
  %v1171 = vpop.permute.xlu0 %1170
  %1172 = vrot.lane.b32.xlu0 %v871, 91
  %v1173 = vpop.permute.xlu0 %1172
  %1174 = vrot.lane.b32.xlu0 %v872, 91
  %v1175 = vpop.permute.xlu0 %1174
  %1176 = vrot.lane.b32.xlu0 %v873, 91
  %v1177 = vpop.permute.xlu0 %1176
  %1178 = vrot.lane.b32.xlu0 %v874, 91
  %v1179 = vpop.permute.xlu0 %1178
  %1180 = vrot.lane.b32.xlu0 %v875, 91
  %v1181 = vpop.permute.xlu0 %1180
  %1182 = vrot.lane.b32.xlu0 %v876, 91
  %v1183 = vpop.permute.xlu0 %1182
  %1184 = vrot.lane.b32.xlu0 %v877, 91
  %v1185 = vpop.permute.xlu0 %1184
  %1186 = vrot.lane.b32.xlu0 %v878, 91
  %v1187 = vpop.permute.xlu0 %1186
  %1188 = vrot.lane.b32.xlu0 %v879, 91
  %v1189 = vpop.permute.xlu0 %1188
  %1190 = vrot.lane.b32.xlu0 %v880, 91
  %v1191 = vpop.permute.xlu0 %1190
  %1192 = vrot.lane.b32.xlu0 %v881, 91
  %v1193 = vpop.permute.xlu0 %1192
  %v1194 = vsel %vm185, %v1171, %v1173
  %v1195 = vsel %vm185, %v1173, %v1175
  %v1196 = vsel %vm185, %v1175, %v1177
  %v1197 = vsel %vm185, %v1177, %v1179
  %v1198 = vsel %vm185, %v1179, %v1181
  %v1199 = vsel %vm185, %v1183, %v1185
  %v1200 = vsel %vm185, %v1185, %v1187
  %v1201 = vsel %vm185, %v1187, %v1189
  %v1202 = vsel %vm185, %v1189, %v1191
  %v1203 = vsel %vm185, %v1191, %v1193
  %1216 = vrot.lane.b32.xlu0 %v870, 90
  %v1217 = vpop.permute.xlu0 %1216
  %1218 = vrot.lane.b32.xlu0 %v871, 90
  %v1219 = vpop.permute.xlu0 %1218
  %1220 = vrot.lane.b32.xlu0 %v872, 90
  %v1221 = vpop.permute.xlu0 %1220
  %1222 = vrot.lane.b32.xlu0 %v873, 90
  %v1223 = vpop.permute.xlu0 %1222
  %1224 = vrot.lane.b32.xlu0 %v874, 90
  %v1225 = vpop.permute.xlu0 %1224
  %1226 = vrot.lane.b32.xlu0 %v875, 90
  %v1227 = vpop.permute.xlu0 %1226
  %1228 = vrot.lane.b32.xlu0 %v876, 90
  %v1229 = vpop.permute.xlu0 %1228
  %1230 = vrot.lane.b32.xlu0 %v877, 90
  %v1231 = vpop.permute.xlu0 %1230
  %1232 = vrot.lane.b32.xlu0 %v878, 90
  %v1233 = vpop.permute.xlu0 %1232
  %1234 = vrot.lane.b32.xlu0 %v879, 90
  %v1235 = vpop.permute.xlu0 %1234
  %1236 = vrot.lane.b32.xlu0 %v880, 90
  %v1237 = vpop.permute.xlu0 %1236
  %1238 = vrot.lane.b32.xlu0 %v881, 90
  %v1239 = vpop.permute.xlu0 %1238
  %v1240 = vsel %vm203, %v1217, %v1219
  %v1241 = vsel %vm203, %v1219, %v1221
  %v1242 = vsel %vm203, %v1221, %v1223
  %v1243 = vsel %vm203, %v1223, %v1225
  %v1244 = vsel %vm203, %v1225, %v1227
  %v1245 = vsel %vm203, %v1229, %v1231
  %v1246 = vsel %vm203, %v1231, %v1233
  %v1247 = vsel %vm203, %v1233, %v1235
  %v1248 = vsel %vm203, %v1235, %v1237
  %v1249 = vsel %vm203, %v1237, %v1239
  %v1262 = vld [vmem:[%s5] sm:$0xff]
  %v1263 = vld [vmem:[%s5 + $0x8] sm:$0xff]
  %v1264 = vld [vmem:[%s5 + $0x10] sm:$0xff]
  %v1265 = vld [vmem:[%s5 + $0x18] sm:$0xff]
  %1267 = vset.pattern.permute.xlu0 0
  %1268 = vperm.xlu0 %1267, %v1262
  %v1269 = vpop.permute.xlu0 %1268
  %1272 = vset.pattern.permute.xlu0 0
  %1273 = vperm.xlu0 %1272, %v1263
  %v1274 = vpop.permute.xlu0 %1273
  %1277 = vset.pattern.permute.xlu0 0
  %1278 = vperm.xlu0 %1277, %v1264
  %v1279 = vpop.permute.xlu0 %1278
  %1282 = vset.pattern.permute.xlu0 0
  %1283 = vperm.xlu0 %1282, %v1265
  %v1284 = vpop.permute.xlu0 %1283
  %v1294 = vunpack.c.l.b16 %v814
  %v1295 = vunpack.c.h.b16 %v814
  %v1296 = vunpack.c.l.b16 %v815
  %v1297 = vunpack.c.l.b16 %v816
  %v1298 = vunpack.c.h.b16 %v816
  %v1299 = vunpack.c.l.b16 %v817
  %v1300 = vunpack.c.l.b16 %v818
  %v1301 = vunpack.c.h.b16 %v818
  %v1302 = vunpack.c.l.b16 %v819
  %v1303 = vunpack.c.l.b16 %v820
  %v1304 = vunpack.c.h.b16 %v820
  %v1305 = vunpack.c.l.b16 %v821
  %v1306 = vpack.c.b16 %v1297, %v1294
  %v1307 = vpack.c.b16 %v1298, %v1295
  %v1308 = vpack.c.b16 %v1299, %v1296
  %v1309 = vpack.c.b16 %v1303, %v1300
  %v1310 = vpack.c.b16 %v1304, %v1301
  %v1311 = vpack.c.b16 %v1305, %v1302
  %vm1316 = vcmask 261120
  %v1318 = vsel %vm1316, %v1308, 0
  %v1321 = vsel %vm1316, %v1311, 0
  %1323 = vmatpush.bf16.msra.mxu0 %v1015
  %1324 = vmatpush.bf16.msra.mxu0 %v1010
  %1325 = vmatpush.bf16.msra.mxu0 %v969
  %1326 = vmatpush.bf16.msra.mxu0 %v964
  %1327 = vmatpush.bf16.msra.mxu0 %v923
  %1328 = vmatpush.bf16.msra.mxu0 %v918
  %1329 = vmatpush.bf16.msra.mxu0 %v876
  %1330 = vmatpush.bf16.msra.mxu0 %v870
  %1331 = vmatmul.bf16.gmra.mxu0 %v1306
  %v1332 = vpop.f32.mrf.mxu0
  %v1333 = vadd.f32 %v1269, %v1332
  %v1334 = vpop.f32.mrf.mxu0
  %v1335 = vadd.f32 %v1274, %v1334
  %1336 = vmatmul.bf16.gmra.mxu0 %v1309
  %v1337 = vpop.f32.mrf.mxu0
  %v1338 = vadd.f32 %v1279, %v1337
  %v1339 = vpop.f32.mrf.mxu0
  %v1340 = vadd.f32 %v1284, %v1339
  %1341 = vdwg.mxu0
  %1342 = vmatpush.bf16.msra.mxu0 %v1199
  %1343 = vmatpush.bf16.msra.mxu0 %v1194
  %1344 = vmatpush.bf16.msra.mxu0 %v1153
  %1345 = vmatpush.bf16.msra.mxu0 %v1148
  %1346 = vmatpush.bf16.msra.mxu0 %v1107
  %1347 = vmatpush.bf16.msra.mxu0 %v1102
  %1348 = vmatpush.bf16.msra.mxu0 %v1061
  %1349 = vmatpush.bf16.msra.mxu0 %v1056
  %1350 = vmatmul.bf16.gmra.mxu0 %v1307
  %v1351 = vpop.f32.mrf.mxu0
  %v1352 = vadd.f32 %v1333, %v1351
  %v1353 = vpop.f32.mrf.mxu0
  %v1354 = vadd.f32 %v1335, %v1353
  %1355 = vmatmul.bf16.gmra.mxu0 %v1310
  %v1356 = vpop.f32.mrf.mxu0
  %v1357 = vadd.f32 %v1338, %v1356
  %v1358 = vpop.f32.mrf.mxu0
  %v1359 = vadd.f32 %v1340, %v1358
  %1360 = vdwg.mxu0
  %1361 = vmatpush.bf16.msra.mxu0 0
  %1362 = vmatpush.bf16.msra.mxu0 0
  %1363 = vmatpush.bf16.msra.mxu0 0
  %1364 = vmatpush.bf16.msra.mxu0 0
  %1365 = vmatpush.bf16.msra.mxu0 0
  %1366 = vmatpush.bf16.msra.mxu0 0
  %1367 = vmatpush.bf16.msra.mxu0 %v1245
  %1368 = vmatpush.bf16.msra.mxu0 %v1240
  %1369 = vmatmul.bf16.gmra.mxu0 %v1318
  %v1370 = vpop.f32.mrf.mxu0
  %v1371 = vadd.f32 %v1352, %v1370
  %v1372 = vpop.f32.mrf.mxu0
  %v1373 = vadd.f32 %v1354, %v1372
  %1374 = vmatmul.bf16.gmra.mxu0 %v1321
  %v1375 = vpop.f32.mrf.mxu0
  %v1376 = vadd.f32 %v1357, %v1375
  %v1377 = vpop.f32.mrf.mxu0
  %v1378 = vadd.f32 %v1359, %v1377
  %1379 = vdwg.mxu0
  %1380 = vmatpush.bf16.msra.mxu0 %v1016
  %1381 = vmatpush.bf16.msra.mxu0 %v1011
  %1382 = vmatpush.bf16.msra.mxu0 %v970
  %1383 = vmatpush.bf16.msra.mxu0 %v965
  %1384 = vmatpush.bf16.msra.mxu0 %v924
  %1385 = vmatpush.bf16.msra.mxu0 %v919
  %1386 = vmatpush.bf16.msra.mxu0 %v877
  %1387 = vmatpush.bf16.msra.mxu0 %v871
  %1388 = vmatmul.bf16.gmra.mxu0 %v1306
  %v1389 = vpop.f32.mrf.mxu0
  %v1390 = vadd.f32 %v1269, %v1389
  %v1391 = vpop.f32.mrf.mxu0
  %v1392 = vadd.f32 %v1274, %v1391
  %1393 = vmatmul.bf16.gmra.mxu0 %v1309
  %v1394 = vpop.f32.mrf.mxu0
  %v1395 = vadd.f32 %v1279, %v1394
  %v1396 = vpop.f32.mrf.mxu0
  %v1397 = vadd.f32 %v1284, %v1396
  %1398 = vdwg.mxu0
  %1399 = vmatpush.bf16.msra.mxu0 %v1200
  %1400 = vmatpush.bf16.msra.mxu0 %v1195
  %1401 = vmatpush.bf16.msra.mxu0 %v1154
  %1402 = vmatpush.bf16.msra.mxu0 %v1149
  %1403 = vmatpush.bf16.msra.mxu0 %v1108
  %1404 = vmatpush.bf16.msra.mxu0 %v1103
  %1405 = vmatpush.bf16.msra.mxu0 %v1062
  %1406 = vmatpush.bf16.msra.mxu0 %v1057
  %1407 = vmatmul.bf16.gmra.mxu0 %v1307
  %v1408 = vpop.f32.mrf.mxu0
  %v1409 = vadd.f32 %v1390, %v1408
  %v1410 = vpop.f32.mrf.mxu0
  %v1411 = vadd.f32 %v1392, %v1410
  %1412 = vmatmul.bf16.gmra.mxu0 %v1310
  %v1413 = vpop.f32.mrf.mxu0
  %v1414 = vadd.f32 %v1395, %v1413
  %v1415 = vpop.f32.mrf.mxu0
  %v1416 = vadd.f32 %v1397, %v1415
  %1417 = vdwg.mxu0
  %1418 = vmatpush.bf16.msra.mxu0 0
  %1419 = vmatpush.bf16.msra.mxu0 0
  %1420 = vmatpush.bf16.msra.mxu0 0
  %1421 = vmatpush.bf16.msra.mxu0 0
  %1422 = vmatpush.bf16.msra.mxu0 0
  %1423 = vmatpush.bf16.msra.mxu0 0
  %1424 = vmatpush.bf16.msra.mxu0 %v1246
  %1425 = vmatpush.bf16.msra.mxu0 %v1241
  %1426 = vmatmul.bf16.gmra.mxu0 %v1318
  %v1427 = vpop.f32.mrf.mxu0
  %v1428 = vadd.f32 %v1409, %v1427
  %v1429 = vpop.f32.mrf.mxu0
  %v1430 = vadd.f32 %v1411, %v1429
  %1431 = vmatmul.bf16.gmra.mxu0 %v1321
  %v1432 = vpop.f32.mrf.mxu0
  %v1433 = vadd.f32 %v1414, %v1432
  %v1434 = vpop.f32.mrf.mxu0
  %v1435 = vadd.f32 %v1416, %v1434
  %1436 = vdwg.mxu0
  %1437 = vmatpush.bf16.msra.mxu0 %v1017
  %1438 = vmatpush.bf16.msra.mxu0 %v1012
  %1439 = vmatpush.bf16.msra.mxu0 %v971
  %1440 = vmatpush.bf16.msra.mxu0 %v966
  %1441 = vmatpush.bf16.msra.mxu0 %v925
  %1442 = vmatpush.bf16.msra.mxu0 %v920
  %1443 = vmatpush.bf16.msra.mxu0 %v878
  %1444 = vmatpush.bf16.msra.mxu0 %v872
  %1445 = vmatmul.bf16.gmra.mxu0 %v1306
  %v1446 = vpop.f32.mrf.mxu0
  %v1447 = vadd.f32 %v1269, %v1446
  %v1448 = vpop.f32.mrf.mxu0
  %v1449 = vadd.f32 %v1274, %v1448
  %1450 = vmatmul.bf16.gmra.mxu0 %v1309
  %v1451 = vpop.f32.mrf.mxu0
  %v1452 = vadd.f32 %v1279, %v1451
  %v1453 = vpop.f32.mrf.mxu0
  %v1454 = vadd.f32 %v1284, %v1453
  %1455 = vdwg.mxu0
  %1456 = vmatpush.bf16.msra.mxu0 %v1201
  %1457 = vmatpush.bf16.msra.mxu0 %v1196
  %1458 = vmatpush.bf16.msra.mxu0 %v1155
  %1459 = vmatpush.bf16.msra.mxu0 %v1150
  %1460 = vmatpush.bf16.msra.mxu0 %v1109
  %1461 = vmatpush.bf16.msra.mxu0 %v1104
  %1462 = vmatpush.bf16.msra.mxu0 %v1063
  %1463 = vmatpush.bf16.msra.mxu0 %v1058
  %1464 = vmatmul.bf16.gmra.mxu0 %v1307
  %v1465 = vpop.f32.mrf.mxu0
  %v1466 = vadd.f32 %v1447, %v1465
  %v1467 = vpop.f32.mrf.mxu0
  %v1468 = vadd.f32 %v1449, %v1467
  %1469 = vmatmul.bf16.gmra.mxu0 %v1310
  %v1470 = vpop.f32.mrf.mxu0
  %v1471 = vadd.f32 %v1452, %v1470
  %v1472 = vpop.f32.mrf.mxu0
  %v1473 = vadd.f32 %v1454, %v1472
  %1474 = vdwg.mxu0
  %1475 = vmatpush.bf16.msra.mxu0 0
  %1476 = vmatpush.bf16.msra.mxu0 0
  %1477 = vmatpush.bf16.msra.mxu0 0
  %1478 = vmatpush.bf16.msra.mxu0 0
  %1479 = vmatpush.bf16.msra.mxu0 0
  %1480 = vmatpush.bf16.msra.mxu0 0
  %1481 = vmatpush.bf16.msra.mxu0 %v1247
  %1482 = vmatpush.bf16.msra.mxu0 %v1242
  %1483 = vmatmul.bf16.gmra.mxu0 %v1318
  %v1484 = vpop.f32.mrf.mxu0
  %v1485 = vadd.f32 %v1466, %v1484
  %v1486 = vpop.f32.mrf.mxu0
  %v1487 = vadd.f32 %v1468, %v1486
  %1488 = vmatmul.bf16.gmra.mxu0 %v1321
  %v1489 = vpop.f32.mrf.mxu0
  %v1490 = vadd.f32 %v1471, %v1489
  %v1491 = vpop.f32.mrf.mxu0
  %v1492 = vadd.f32 %v1473, %v1491
  %1493 = vdwg.mxu0
  %1494 = vmatpush.bf16.msra.mxu0 %v1018
  %1495 = vmatpush.bf16.msra.mxu0 %v1013
  %1496 = vmatpush.bf16.msra.mxu0 %v972
  %1497 = vmatpush.bf16.msra.mxu0 %v967
  %1498 = vmatpush.bf16.msra.mxu0 %v926
  %1499 = vmatpush.bf16.msra.mxu0 %v921
  %1500 = vmatpush.bf16.msra.mxu0 %v879
  %1501 = vmatpush.bf16.msra.mxu0 %v873
  %1502 = vmatmul.bf16.gmra.mxu0 %v1306
  %v1503 = vpop.f32.mrf.mxu0
  %v1504 = vadd.f32 %v1269, %v1503
  %v1505 = vpop.f32.mrf.mxu0
  %v1506 = vadd.f32 %v1274, %v1505
  %1507 = vmatmul.bf16.gmra.mxu0 %v1309
  %v1508 = vpop.f32.mrf.mxu0
  %v1509 = vadd.f32 %v1279, %v1508
  %v1510 = vpop.f32.mrf.mxu0
  %v1511 = vadd.f32 %v1284, %v1510
  %1512 = vdwg.mxu0
  %1513 = vmatpush.bf16.msra.mxu0 %v1202
  %1514 = vmatpush.bf16.msra.mxu0 %v1197
  %1515 = vmatpush.bf16.msra.mxu0 %v1156
  %1516 = vmatpush.bf16.msra.mxu0 %v1151
  %1517 = vmatpush.bf16.msra.mxu0 %v1110
  %1518 = vmatpush.bf16.msra.mxu0 %v1105
  %1519 = vmatpush.bf16.msra.mxu0 %v1064
  %1520 = vmatpush.bf16.msra.mxu0 %v1059
  %1521 = vmatmul.bf16.gmra.mxu0 %v1307
  %v1522 = vpop.f32.mrf.mxu0
  %v1523 = vadd.f32 %v1504, %v1522
  %v1524 = vpop.f32.mrf.mxu0
  %v1525 = vadd.f32 %v1506, %v1524
  %1526 = vmatmul.bf16.gmra.mxu0 %v1310
  %v1527 = vpop.f32.mrf.mxu0
  %v1528 = vadd.f32 %v1509, %v1527
  %v1529 = vpop.f32.mrf.mxu0
  %v1530 = vadd.f32 %v1511, %v1529
  %1531 = vdwg.mxu0
  %1532 = vmatpush.bf16.msra.mxu0 0
  %1533 = vmatpush.bf16.msra.mxu0 0
  %1534 = vmatpush.bf16.msra.mxu0 0
  %1535 = vmatpush.bf16.msra.mxu0 0
  %1536 = vmatpush.bf16.msra.mxu0 0
  %1537 = vmatpush.bf16.msra.mxu0 0
  %1538 = vmatpush.bf16.msra.mxu0 %v1248
  %1539 = vmatpush.bf16.msra.mxu0 %v1243
  %1540 = vmatmul.bf16.gmra.mxu0 %v1318
  %v1541 = vpop.f32.mrf.mxu0
  %v1542 = vadd.f32 %v1523, %v1541
  %v1543 = vpop.f32.mrf.mxu0
  %v1544 = vadd.f32 %v1525, %v1543
  %1545 = vmatmul.bf16.gmra.mxu0 %v1321
  %v1546 = vpop.f32.mrf.mxu0
  %v1547 = vadd.f32 %v1528, %v1546
  %v1548 = vpop.f32.mrf.mxu0
  %v1549 = vadd.f32 %v1530, %v1548
  %1550 = vdwg.mxu0
  %1551 = vmatpush.bf16.msra.mxu0 %v1019
  %1552 = vmatpush.bf16.msra.mxu0 %v1014
  %1553 = vmatpush.bf16.msra.mxu0 %v973
  %1554 = vmatpush.bf16.msra.mxu0 %v968
  %1555 = vmatpush.bf16.msra.mxu0 %v927
  %1556 = vmatpush.bf16.msra.mxu0 %v922
  %1557 = vmatpush.bf16.msra.mxu0 %v880
  %1558 = vmatpush.bf16.msra.mxu0 %v874
  %1559 = vmatmul.bf16.gmra.mxu0 %v1306
  %v1560 = vpop.f32.mrf.mxu0
  %v1561 = vadd.f32 %v1269, %v1560
  %v1562 = vpop.f32.mrf.mxu0
  %v1563 = vadd.f32 %v1274, %v1562
  %1564 = vmatmul.bf16.gmra.mxu0 %v1309
  %v1565 = vpop.f32.mrf.mxu0
  %v1566 = vadd.f32 %v1279, %v1565
  %v1567 = vpop.f32.mrf.mxu0
  %v1568 = vadd.f32 %v1284, %v1567
  %1569 = vdwg.mxu0
  %1570 = vmatpush.bf16.msra.mxu0 %v1203
  %1571 = vmatpush.bf16.msra.mxu0 %v1198
  %1572 = vmatpush.bf16.msra.mxu0 %v1157
  %1573 = vmatpush.bf16.msra.mxu0 %v1152
  %1574 = vmatpush.bf16.msra.mxu0 %v1111
  %1575 = vmatpush.bf16.msra.mxu0 %v1106
  %1576 = vmatpush.bf16.msra.mxu0 %v1065
  %1577 = vmatpush.bf16.msra.mxu0 %v1060
  %1578 = vmatmul.bf16.gmra.mxu0 %v1307
  %v1579 = vpop.f32.mrf.mxu0
  %v1580 = vadd.f32 %v1561, %v1579
  %v1581 = vpop.f32.mrf.mxu0
  %v1582 = vadd.f32 %v1563, %v1581
  %1583 = vmatmul.bf16.gmra.mxu0 %v1310
  %v1584 = vpop.f32.mrf.mxu0
  %v1585 = vadd.f32 %v1566, %v1584
  %v1586 = vpop.f32.mrf.mxu0
  %v1587 = vadd.f32 %v1568, %v1586
  %1588 = vdwg.mxu0
  %1589 = vmatpush.bf16.msra.mxu0 0
  %1590 = vmatpush.bf16.msra.mxu0 0
  %1591 = vmatpush.bf16.msra.mxu0 0
  %1592 = vmatpush.bf16.msra.mxu0 0
  %1593 = vmatpush.bf16.msra.mxu0 0
  %1594 = vmatpush.bf16.msra.mxu0 0
  %1595 = vmatpush.bf16.msra.mxu0 %v1249
  %1596 = vmatpush.bf16.msra.mxu0 %v1244
  %1597 = vmatmul.bf16.gmra.mxu0 %v1318
  %v1598 = vpop.f32.mrf.mxu0
  %v1599 = vadd.f32 %v1580, %v1598
  %v1600 = vpop.f32.mrf.mxu0
  %v1601 = vadd.f32 %v1582, %v1600
  %1602 = vmatmul.bf16.gmra.mxu0 %v1321
  %v1603 = vpop.f32.mrf.mxu0
  %v1604 = vadd.f32 %v1585, %v1603
  %v1605 = vpop.f32.mrf.mxu0
  %v1606 = vadd.f32 %v1587, %v1605
  %1607 = vdwg.mxu0
  %1608 = vmatpush.bf16.msra.mxu0 %v1009
  %1609 = vmatpush.bf16.msra.mxu0 %v997
  %1610 = vmatpush.bf16.msra.mxu0 %v963
  %1611 = vmatpush.bf16.msra.mxu0 %v951
  %1612 = vmatpush.bf16.msra.mxu0 %v917
  %1613 = vmatpush.bf16.msra.mxu0 %v905
  %1614 = vmatpush.bf16.msra.mxu0 %v881
  %1615 = vmatpush.bf16.msra.mxu0 %v875
  %1616 = vmatmul.bf16.gmra.mxu0 %v1306
  %v1617 = vpop.f32.mrf.mxu0
  %v1618 = vadd.f32 %v1269, %v1617
  %v1619 = vpop.f32.mrf.mxu0
  %v1620 = vadd.f32 %v1274, %v1619
  %1621 = vmatmul.bf16.gmra.mxu0 %v1309
  %v1622 = vpop.f32.mrf.mxu0
  %v1623 = vadd.f32 %v1279, %v1622
  %v1624 = vpop.f32.mrf.mxu0
  %v1625 = vadd.f32 %v1284, %v1624
  %1626 = vdwg.mxu0
  %1627 = vmatpush.bf16.msra.mxu0 %v1193
  %1628 = vmatpush.bf16.msra.mxu0 %v1181
  %1629 = vmatpush.bf16.msra.mxu0 %v1147
  %1630 = vmatpush.bf16.msra.mxu0 %v1135
  %1631 = vmatpush.bf16.msra.mxu0 %v1101
  %1632 = vmatpush.bf16.msra.mxu0 %v1089
  %1633 = vmatpush.bf16.msra.mxu0 %v1055
  %1634 = vmatpush.bf16.msra.mxu0 %v1043
  %1635 = vmatmul.bf16.gmra.mxu0 %v1307
  %v1636 = vpop.f32.mrf.mxu0
  %v1637 = vadd.f32 %v1618, %v1636
  %v1638 = vpop.f32.mrf.mxu0
  %v1639 = vadd.f32 %v1620, %v1638
  %1640 = vmatmul.bf16.gmra.mxu0 %v1310
  %v1641 = vpop.f32.mrf.mxu0
  %v1642 = vadd.f32 %v1623, %v1641
  %v1643 = vpop.f32.mrf.mxu0
  %v1644 = vadd.f32 %v1625, %v1643
  %1645 = vdwg.mxu0
  %1646 = vmatpush.bf16.msra.mxu0 0
  %1647 = vmatpush.bf16.msra.mxu0 0
  %1648 = vmatpush.bf16.msra.mxu0 0
  %1649 = vmatpush.bf16.msra.mxu0 0
  %1650 = vmatpush.bf16.msra.mxu0 0
  %1651 = vmatpush.bf16.msra.mxu0 0
  %1652 = vmatpush.bf16.msra.mxu0 %v1239
  %1653 = vmatpush.bf16.msra.mxu0 %v1227
  %1654 = vmatmul.bf16.gmra.mxu0 %v1318
  %v1655 = vpop.f32.mrf.mxu0
  %v1656 = vadd.f32 %v1637, %v1655
  %v1657 = vpop.f32.mrf.mxu0
  %v1658 = vadd.f32 %v1639, %v1657
  %1659 = vmatmul.bf16.gmra.mxu0 %v1321
  %v1660 = vpop.f32.mrf.mxu0
  %v1661 = vadd.f32 %v1642, %v1660
  %v1662 = vpop.f32.mrf.mxu0
  %v1663 = vadd.f32 %v1644, %v1662
  %1664 = vdwg.mxu0
  %v1665 = vmax.f32 %v1371, 0.0
  %v1666 = vmax.f32 %v1428, 0.0
  %v1667 = vmax.f32 %v1485, 0.0
  %v1668 = vmax.f32 %v1542, 0.0
  %v1669 = vmax.f32 %v1599, 0.0
  %v1670 = vmax.f32 %v1656, 0.0
  %v1671 = vmax.f32 %v1373, 0.0
  %v1672 = vmax.f32 %v1430, 0.0
  %v1673 = vmax.f32 %v1487, 0.0
  %v1674 = vmax.f32 %v1544, 0.0
  %v1675 = vmax.f32 %v1601, 0.0
  %v1676 = vmax.f32 %v1658, 0.0
  %v1677 = vmax.f32 %v1376, 0.0
  %v1678 = vmax.f32 %v1433, 0.0
  %v1679 = vmax.f32 %v1490, 0.0
  %v1680 = vmax.f32 %v1547, 0.0
  %v1681 = vmax.f32 %v1604, 0.0
  %v1682 = vmax.f32 %v1661, 0.0
  %v1683 = vmax.f32 %v1378, 0.0
  %v1684 = vmax.f32 %v1435, 0.0
  %v1685 = vmax.f32 %v1492, 0.0
  %v1686 = vmax.f32 %v1549, 0.0
  %v1687 = vmax.f32 %v1606, 0.0
  %v1688 = vmax.f32 %v1663, 0.0
  %v1689 = vpack.c.bf16 %v1666, %v1665
  %v1690 = vpack.c.bf16 %v1668, %v1667
  %v1691 = vpack.c.bf16 %v1670, %v1669
  %v1692 = vpack.c.bf16 %v1672, %v1671
  %v1693 = vpack.c.bf16 %v1674, %v1673
  %v1694 = vpack.c.bf16 %v1676, %v1675
  %v1695 = vpack.c.bf16 %v1678, %v1677
  %v1696 = vpack.c.bf16 %v1680, %v1679
  %v1697 = vpack.c.bf16 %v1682, %v1681
  %v1698 = vpack.c.bf16 %v1684, %v1683
  %v1699 = vpack.c.bf16 %v1686, %v1685
  %v1700 = vpack.c.bf16 %v1688, %v1687
  %v1701 = vunpack.c.l.bf16 %v1689
  %v1702 = vunpack.c.h.bf16 %v1689
  %v1703 = vunpack.c.l.bf16 %v1690
  %v1704 = vunpack.c.h.bf16 %v1690
  %v1705 = vunpack.c.l.bf16 %v1691
  %v1706 = vunpack.c.h.bf16 %v1691
  %v1707 = vunpack.c.l.bf16 %v1692
  %v1708 = vunpack.c.h.bf16 %v1692
  %v1709 = vunpack.c.l.bf16 %v1693
  %v1710 = vunpack.c.h.bf16 %v1693
  %v1711 = vunpack.c.l.bf16 %v1694
  %v1712 = vunpack.c.h.bf16 %v1694
  %v1713 = vunpack.c.l.bf16 %v1695
  %v1714 = vunpack.c.h.bf16 %v1695
  %v1715 = vunpack.c.l.bf16 %v1696
  %v1716 = vunpack.c.h.bf16 %v1696
  %v1717 = vunpack.c.l.bf16 %v1697
  %v1718 = vunpack.c.h.bf16 %v1697
  %v1719 = vunpack.c.l.bf16 %v1698
  %v1720 = vunpack.c.h.bf16 %v1698
  %v1721 = vunpack.c.l.bf16 %v1699
  %v1722 = vunpack.c.h.bf16 %v1699
  %v1723 = vunpack.c.l.bf16 %v1700
  %v1724 = vunpack.c.h.bf16 %v1700
  %v1725 = vmul.f32 %v1701, %v673
  %v1726 = vmul.f32 %v1702, %v674
  %v1727 = vmul.f32 %v1703, %v675
  %v1728 = vmul.f32 %v1704, %v676
  %v1729 = vmul.f32 %v1705, %v677
  %v1730 = vmul.f32 %v1706, %v678
  %v1731 = vmul.f32 %v1707, %v673
  %v1732 = vmul.f32 %v1708, %v674
  %v1733 = vmul.f32 %v1709, %v675
  %v1734 = vmul.f32 %v1710, %v676
  %v1735 = vmul.f32 %v1711, %v677
  %v1736 = vmul.f32 %v1712, %v678
  %v1737 = vmul.f32 %v1713, %v673
  %v1738 = vmul.f32 %v1714, %v674
  %v1739 = vmul.f32 %v1715, %v675
  %v1740 = vmul.f32 %v1716, %v676
  %v1741 = vmul.f32 %v1717, %v677
  %v1742 = vmul.f32 %v1718, %v678
  %v1743 = vmul.f32 %v1719, %v673
  %v1744 = vmul.f32 %v1720, %v674
  %v1745 = vmul.f32 %v1721, %v675
  %v1746 = vmul.f32 %v1722, %v676
  %v1747 = vmul.f32 %v1723, %v677
  %v1748 = vmul.f32 %v1724, %v678
  %v1749 = vpack.c.bf16 %v1726, %v1725
  %v1750 = vpack.c.bf16 %v1728, %v1727
  %v1751 = vpack.c.bf16 %v1730, %v1729
  %v1752 = vpack.c.bf16 %v1732, %v1731
  %v1753 = vpack.c.bf16 %v1734, %v1733
  %v1754 = vpack.c.bf16 %v1736, %v1735
  %v1755 = vpack.c.bf16 %v1738, %v1737
  %v1756 = vpack.c.bf16 %v1740, %v1739
  %v1757 = vpack.c.bf16 %v1742, %v1741
  %v1758 = vpack.c.bf16 %v1744, %v1743
  %v1759 = vpack.c.bf16 %v1746, %v1745
  %v1760 = vpack.c.bf16 %v1748, %v1747
  %1773 = vrot.lane.b32.xlu0 %v1749, 19
  %v1774 = vpop.permute.xlu0 %1773
  %1775 = vrot.lane.b32.xlu0 %v1750, 19
  %v1776 = vpop.permute.xlu0 %1775
  %1777 = vrot.lane.b32.xlu0 %v1751, 19
  %v1778 = vpop.permute.xlu0 %1777
  %1779 = vrot.lane.b32.xlu0 %v1752, 19
  %v1780 = vpop.permute.xlu0 %1779
  %1781 = vrot.lane.b32.xlu0 %v1753, 19
  %v1782 = vpop.permute.xlu0 %1781
  %1783 = vrot.lane.b32.xlu0 %v1754, 19
  %v1784 = vpop.permute.xlu0 %1783
  %1785 = vrot.lane.b32.xlu0 %v1755, 19
  %v1786 = vpop.permute.xlu0 %1785
  %1787 = vrot.lane.b32.xlu0 %v1756, 19
  %v1788 = vpop.permute.xlu0 %1787
  %1789 = vrot.lane.b32.xlu0 %v1757, 19
  %v1790 = vpop.permute.xlu0 %1789
  %1791 = vrot.lane.b32.xlu0 %v1758, 19
  %v1792 = vpop.permute.xlu0 %1791
  %1793 = vrot.lane.b32.xlu0 %v1759, 19
  %v1794 = vpop.permute.xlu0 %1793
  %1795 = vrot.lane.b32.xlu0 %v1760, 19
  %v1796 = vpop.permute.xlu0 %1795
  %v1797 = vrot.slane %v1774, 4
  %v1798 = vrot.slane %v1776, 4
  %v1799 = vrot.slane %v1778, 4
  %v1800 = vrot.slane %v1780, 4
  %v1801 = vrot.slane %v1782, 4
  %v1802 = vrot.slane %v1784, 4
  %v1803 = vrot.slane %v1786, 4
  %v1804 = vrot.slane %v1788, 4
  %v1805 = vrot.slane %v1790, 4
  %v1806 = vrot.slane %v1792, 4
  %v1807 = vrot.slane %v1794, 4
  %v1808 = vrot.slane %v1796, 4
  %v1809 = vsel %vm763, %v1797, %v1774
  %v1810 = vsel %vm765, %v1797, %v1798
  %v1811 = vsel %vm763, %v1810, %v1776
  %v1812 = vsel %vm765, %v1798, %v1799
  %v1813 = vsel %vm763, %v1812, %v1778
  %v1814 = vsel %vm763, %v1800, %v1780
  %v1815 = vsel %vm765, %v1800, %v1801
  %v1816 = vsel %vm763, %v1815, %v1782
  %v1817 = vsel %vm765, %v1801, %v1802
  %v1818 = vsel %vm763, %v1817, %v1784
  %v1819 = vsel %vm763, %v1803, %v1786
  %v1820 = vsel %vm765, %v1803, %v1804
  %v1821 = vsel %vm763, %v1820, %v1788
  %v1822 = vsel %vm765, %v1804, %v1805
  %v1823 = vsel %vm763, %v1822, %v1790
  %v1824 = vsel %vm763, %v1806, %v1792
  %v1825 = vsel %vm765, %v1806, %v1807
  %v1826 = vsel %vm763, %v1825, %v1794
  %v1827 = vsel %vm765, %v1807, %v1808
  %v1828 = vsel %vm763, %v1827, %v1796
  %1841 = vst.msk [vmem:[#allocation2] sm:$0xff] %vm799, %v1809
  %1842 = vst [vmem:[#allocation2 + $0x8] sm:$0xff] %v1811
  %1843 = vst.msk [vmem:[#allocation2 + $0x10] sm:$0xff] %vm803, %v1813
  %1844 = vst.msk [vmem:[#allocation2 + $0x18] sm:$0xff] %vm799, %v1814
  %1845 = vst [vmem:[#allocation2 + $0x20] sm:$0xff] %v1816
  %1846 = vst.msk [vmem:[#allocation2 + $0x28] sm:$0xff] %vm803, %v1818
  %1847 = vst.msk [vmem:[#allocation2 + $0x30] sm:$0xff] %vm799, %v1819
  %1848 = vst [vmem:[#allocation2 + $0x38] sm:$0xff] %v1821
  %1849 = vst.msk [vmem:[#allocation2 + $0x40] sm:$0xff] %vm803, %v1823
  %1850 = vst.msk [vmem:[#allocation2 + $0x48] sm:$0xff] %vm799, %v1824
  %1851 = vst [vmem:[#allocation2 + $0x50] sm:$0xff] %v1826
  %1852 = vst.msk [vmem:[#allocation2 + $0x58] sm:$0xff] %vm803, %v1828
  %v1853 = vld [vmem:[%s6] sm:$0xff]
  %v1854 = vld [vmem:[%s6 + $0x8] sm:$0xf]
  %v1855 = vld [vmem:[%s6 + $0xc] sm:$0xff]
  %v1856 = vld [vmem:[%s6 + $0x14] sm:$0xf]
  %v1857 = vld [vmem:[%s6 + $0x18] sm:$0xff]
  %v1858 = vld [vmem:[%s6 + $0x20] sm:$0xf]
  %v1859 = vld [vmem:[%s6 + $0x24] sm:$0xff]
  %v1860 = vld [vmem:[%s6 + $0x2c] sm:$0xf]
  %v1861 = vld [vmem:[#allocation2] sm:$0xff]
  %v1862 = vld [vmem:[#allocation2 + $0x8] sm:$0xff]
  %v1863 = vld [vmem:[#allocation2 + $0x10] sm:$0xff]
  %v1864 = vld [vmem:[#allocation2 + $0x18] sm:$0xff]
  %v1865 = vld [vmem:[#allocation2 + $0x20] sm:$0xff]
  %v1866 = vld [vmem:[#allocation2 + $0x28] sm:$0xff]
  %v1867 = vld [vmem:[#allocation2 + $0x30] sm:$0xff]
  %v1868 = vld [vmem:[#allocation2 + $0x38] sm:$0xff]
  %v1869 = vld [vmem:[#allocation2 + $0x40] sm:$0xff]
  %v1870 = vld [vmem:[#allocation2 + $0x48] sm:$0xff]
  %v1871 = vld [vmem:[#allocation2 + $0x50] sm:$0xff]
  %v1872 = vld [vmem:[#allocation2 + $0x58] sm:$0xff]
  %v1885 = vunpack.c.l.b16 %v1861
  %v1886 = vunpack.c.h.b16 %v1861
  %v1887 = vunpack.c.l.b16 %v1862
  %v1888 = vunpack.c.h.b16 %v1862
  %v1889 = vunpack.c.l.b16 %v1863
  %v1890 = vunpack.c.h.b16 %v1863
  %v1891 = vunpack.c.l.b16 %v1864
  %v1892 = vunpack.c.h.b16 %v1864
  %v1893 = vunpack.c.l.b16 %v1865
  %v1894 = vunpack.c.h.b16 %v1865
  %v1895 = vunpack.c.l.b16 %v1866
  %v1896 = vunpack.c.h.b16 %v1866
  %v1897 = vunpack.c.l.b16 %v1867
  %v1898 = vunpack.c.h.b16 %v1867
  %v1899 = vunpack.c.l.b16 %v1868
  %v1900 = vunpack.c.h.b16 %v1868
  %v1901 = vunpack.c.l.b16 %v1869
  %v1902 = vunpack.c.h.b16 %v1869
  %v1903 = vunpack.c.l.b16 %v1870
  %v1904 = vunpack.c.h.b16 %v1870
  %v1905 = vunpack.c.l.b16 %v1871
  %v1906 = vunpack.c.h.b16 %v1871
  %v1907 = vunpack.c.l.b16 %v1872
  %v1908 = vunpack.c.h.b16 %v1872
  %v1909 = vpack.c.b16 %v1891, %v1885
  %v1910 = vpack.c.b16 %v1892, %v1886
  %v1911 = vpack.c.b16 %v1893, %v1887
  %v1912 = vpack.c.b16 %v1894, %v1888
  %v1913 = vpack.c.b16 %v1895, %v1889
  %v1914 = vpack.c.b16 %v1896, %v1890
  %v1915 = vpack.c.b16 %v1903, %v1897
  %v1916 = vpack.c.b16 %v1904, %v1898
  %v1917 = vpack.c.b16 %v1905, %v1899
  %v1918 = vpack.c.b16 %v1906, %v1900
  %v1919 = vpack.c.b16 %v1907, %v1901
  %v1920 = vpack.c.b16 %v1908, %v1902
  %1933 = vrot.lane.b32.xlu0 %v1909, 127
  %v1934 = vpop.permute.xlu0 %1933
  %1935 = vrot.lane.b32.xlu0 %v1910, 127
  %v1936 = vpop.permute.xlu0 %1935
  %1937 = vrot.lane.b32.xlu0 %v1911, 127
  %v1938 = vpop.permute.xlu0 %1937
  %1939 = vrot.lane.b32.xlu0 %v1912, 127
  %v1940 = vpop.permute.xlu0 %1939
  %1941 = vrot.lane.b32.xlu0 %v1913, 127
  %v1942 = vpop.permute.xlu0 %1941
  %1943 = vrot.lane.b32.xlu0 %v1914, 127
  %v1944 = vpop.permute.xlu0 %1943
  %1945 = vrot.lane.b32.xlu0 %v1915, 127
  %v1946 = vpop.permute.xlu0 %1945
  %1947 = vrot.lane.b32.xlu0 %v1916, 127
  %v1948 = vpop.permute.xlu0 %1947
  %1949 = vrot.lane.b32.xlu0 %v1917, 127
  %v1950 = vpop.permute.xlu0 %1949
  %1951 = vrot.lane.b32.xlu0 %v1918, 127
  %v1952 = vpop.permute.xlu0 %1951
  %1953 = vrot.lane.b32.xlu0 %v1919, 127
  %v1954 = vpop.permute.xlu0 %1953
  %1955 = vrot.lane.b32.xlu0 %v1920, 127
  %v1956 = vpop.permute.xlu0 %1955
  %v1957 = vsel %vm77, %v1934, %v1936
  %v1958 = vsel %vm77, %v1936, %v1938
  %v1959 = vsel %vm77, %v1938, %v1940
  %v1960 = vsel %vm77, %v1940, %v1942
  %v1961 = vsel %vm77, %v1942, %v1944
  %v1962 = vsel %vm77, %v1946, %v1948
  %v1963 = vsel %vm77, %v1948, %v1950
  %v1964 = vsel %vm77, %v1950, %v1952
  %v1965 = vsel %vm77, %v1952, %v1954
  %v1966 = vsel %vm77, %v1954, %v1956
  %1979 = vrot.lane.b32.xlu0 %v1909, 126
  %v1980 = vpop.permute.xlu0 %1979
  %1981 = vrot.lane.b32.xlu0 %v1910, 126
  %v1982 = vpop.permute.xlu0 %1981
  %1983 = vrot.lane.b32.xlu0 %v1911, 126
  %v1984 = vpop.permute.xlu0 %1983
  %1985 = vrot.lane.b32.xlu0 %v1912, 126
  %v1986 = vpop.permute.xlu0 %1985
  %1987 = vrot.lane.b32.xlu0 %v1913, 126
  %v1988 = vpop.permute.xlu0 %1987
  %1989 = vrot.lane.b32.xlu0 %v1914, 126
  %v1990 = vpop.permute.xlu0 %1989
  %1991 = vrot.lane.b32.xlu0 %v1915, 126
  %v1992 = vpop.permute.xlu0 %1991
  %1993 = vrot.lane.b32.xlu0 %v1916, 126
  %v1994 = vpop.permute.xlu0 %1993
  %1995 = vrot.lane.b32.xlu0 %v1917, 126
  %v1996 = vpop.permute.xlu0 %1995
  %1997 = vrot.lane.b32.xlu0 %v1918, 126
  %v1998 = vpop.permute.xlu0 %1997
  %1999 = vrot.lane.b32.xlu0 %v1919, 126
  %v2000 = vpop.permute.xlu0 %1999
  %2001 = vrot.lane.b32.xlu0 %v1920, 126
  %v2002 = vpop.permute.xlu0 %2001
  %v2003 = vsel %vm95, %v1980, %v1982
  %v2004 = vsel %vm95, %v1982, %v1984
  %v2005 = vsel %vm95, %v1984, %v1986
  %v2006 = vsel %vm95, %v1986, %v1988
  %v2007 = vsel %vm95, %v1988, %v1990
  %v2008 = vsel %vm95, %v1992, %v1994
  %v2009 = vsel %vm95, %v1994, %v1996
  %v2010 = vsel %vm95, %v1996, %v1998
  %v2011 = vsel %vm95, %v1998, %v2000
  %v2012 = vsel %vm95, %v2000, %v2002
  %2025 = vrot.lane.b32.xlu0 %v1909, 110
  %v2026 = vpop.permute.xlu0 %2025
  %2027 = vrot.lane.b32.xlu0 %v1910, 110
  %v2028 = vpop.permute.xlu0 %2027
  %2029 = vrot.lane.b32.xlu0 %v1911, 110
  %v2030 = vpop.permute.xlu0 %2029
  %2031 = vrot.lane.b32.xlu0 %v1912, 110
  %v2032 = vpop.permute.xlu0 %2031
  %2033 = vrot.lane.b32.xlu0 %v1913, 110
  %v2034 = vpop.permute.xlu0 %2033
  %2035 = vrot.lane.b32.xlu0 %v1914, 110
  %v2036 = vpop.permute.xlu0 %2035
  %2037 = vrot.lane.b32.xlu0 %v1915, 110
  %v2038 = vpop.permute.xlu0 %2037
  %2039 = vrot.lane.b32.xlu0 %v1916, 110
  %v2040 = vpop.permute.xlu0 %2039
  %2041 = vrot.lane.b32.xlu0 %v1917, 110
  %v2042 = vpop.permute.xlu0 %2041
  %2043 = vrot.lane.b32.xlu0 %v1918, 110
  %v2044 = vpop.permute.xlu0 %2043
  %2045 = vrot.lane.b32.xlu0 %v1919, 110
  %v2046 = vpop.permute.xlu0 %2045
  %2047 = vrot.lane.b32.xlu0 %v1920, 110
  %v2048 = vpop.permute.xlu0 %2047
  %v2049 = vsel %vm113, %v2026, %v2028
  %v2050 = vsel %vm113, %v2028, %v2030
  %v2051 = vsel %vm113, %v2030, %v2032
  %v2052 = vsel %vm113, %v2032, %v2034
  %v2053 = vsel %vm113, %v2034, %v2036
  %v2054 = vsel %vm113, %v2038, %v2040
  %v2055 = vsel %vm113, %v2040, %v2042
  %v2056 = vsel %vm113, %v2042, %v2044
  %v2057 = vsel %vm113, %v2044, %v2046
  %v2058 = vsel %vm113, %v2046, %v2048
  %2071 = vrot.lane.b32.xlu0 %v1909, 109
  %v2072 = vpop.permute.xlu0 %2071
  %2073 = vrot.lane.b32.xlu0 %v1910, 109
  %v2074 = vpop.permute.xlu0 %2073
  %2075 = vrot.lane.b32.xlu0 %v1911, 109
  %v2076 = vpop.permute.xlu0 %2075
  %2077 = vrot.lane.b32.xlu0 %v1912, 109
  %v2078 = vpop.permute.xlu0 %2077
  %2079 = vrot.lane.b32.xlu0 %v1913, 109
  %v2080 = vpop.permute.xlu0 %2079
  %2081 = vrot.lane.b32.xlu0 %v1914, 109
  %v2082 = vpop.permute.xlu0 %2081
  %2083 = vrot.lane.b32.xlu0 %v1915, 109
  %v2084 = vpop.permute.xlu0 %2083
  %2085 = vrot.lane.b32.xlu0 %v1916, 109
  %v2086 = vpop.permute.xlu0 %2085
  %2087 = vrot.lane.b32.xlu0 %v1917, 109
  %v2088 = vpop.permute.xlu0 %2087
  %2089 = vrot.lane.b32.xlu0 %v1918, 109
  %v2090 = vpop.permute.xlu0 %2089
  %2091 = vrot.lane.b32.xlu0 %v1919, 109
  %v2092 = vpop.permute.xlu0 %2091
  %2093 = vrot.lane.b32.xlu0 %v1920, 109
  %v2094 = vpop.permute.xlu0 %2093
  %v2095 = vsel %vm131, %v2072, %v2074
  %v2096 = vsel %vm131, %v2074, %v2076
  %v2097 = vsel %vm131, %v2076, %v2078
  %v2098 = vsel %vm131, %v2078, %v2080
  %v2099 = vsel %vm131, %v2080, %v2082
  %v2100 = vsel %vm131, %v2084, %v2086
  %v2101 = vsel %vm131, %v2086, %v2088
  %v2102 = vsel %vm131, %v2088, %v2090
  %v2103 = vsel %vm131, %v2090, %v2092
  %v2104 = vsel %vm131, %v2092, %v2094
  %2117 = vrot.lane.b32.xlu0 %v1909, 108
  %v2118 = vpop.permute.xlu0 %2117
  %2119 = vrot.lane.b32.xlu0 %v1910, 108
  %v2120 = vpop.permute.xlu0 %2119
  %2121 = vrot.lane.b32.xlu0 %v1911, 108
  %v2122 = vpop.permute.xlu0 %2121
  %2123 = vrot.lane.b32.xlu0 %v1912, 108
  %v2124 = vpop.permute.xlu0 %2123
  %2125 = vrot.lane.b32.xlu0 %v1913, 108
  %v2126 = vpop.permute.xlu0 %2125
  %2127 = vrot.lane.b32.xlu0 %v1914, 108
  %v2128 = vpop.permute.xlu0 %2127
  %2129 = vrot.lane.b32.xlu0 %v1915, 108
  %v2130 = vpop.permute.xlu0 %2129
  %2131 = vrot.lane.b32.xlu0 %v1916, 108
  %v2132 = vpop.permute.xlu0 %2131
  %2133 = vrot.lane.b32.xlu0 %v1917, 108
  %v2134 = vpop.permute.xlu0 %2133
  %2135 = vrot.lane.b32.xlu0 %v1918, 108
  %v2136 = vpop.permute.xlu0 %2135
  %2137 = vrot.lane.b32.xlu0 %v1919, 108
  %v2138 = vpop.permute.xlu0 %2137
  %2139 = vrot.lane.b32.xlu0 %v1920, 108
  %v2140 = vpop.permute.xlu0 %2139
  %v2141 = vsel %vm149, %v2118, %v2120
  %v2142 = vsel %vm149, %v2120, %v2122
  %v2143 = vsel %vm149, %v2122, %v2124
  %v2144 = vsel %vm149, %v2124, %v2126
  %v2145 = vsel %vm149, %v2126, %v2128
  %v2146 = vsel %vm149, %v2130, %v2132
  %v2147 = vsel %vm149, %v2132, %v2134
  %v2148 = vsel %vm149, %v2134, %v2136
  %v2149 = vsel %vm149, %v2136, %v2138
  %v2150 = vsel %vm149, %v2138, %v2140
  %2163 = vrot.lane.b32.xlu0 %v1909, 92
  %v2164 = vpop.permute.xlu0 %2163
  %2165 = vrot.lane.b32.xlu0 %v1910, 92
  %v2166 = vpop.permute.xlu0 %2165
  %2167 = vrot.lane.b32.xlu0 %v1911, 92
  %v2168 = vpop.permute.xlu0 %2167
  %2169 = vrot.lane.b32.xlu0 %v1912, 92
  %v2170 = vpop.permute.xlu0 %2169
  %2171 = vrot.lane.b32.xlu0 %v1913, 92
  %v2172 = vpop.permute.xlu0 %2171
  %2173 = vrot.lane.b32.xlu0 %v1914, 92
  %v2174 = vpop.permute.xlu0 %2173
  %2175 = vrot.lane.b32.xlu0 %v1915, 92
  %v2176 = vpop.permute.xlu0 %2175
  %2177 = vrot.lane.b32.xlu0 %v1916, 92
  %v2178 = vpop.permute.xlu0 %2177
  %2179 = vrot.lane.b32.xlu0 %v1917, 92
  %v2180 = vpop.permute.xlu0 %2179
  %2181 = vrot.lane.b32.xlu0 %v1918, 92
  %v2182 = vpop.permute.xlu0 %2181
  %2183 = vrot.lane.b32.xlu0 %v1919, 92
  %v2184 = vpop.permute.xlu0 %2183
  %2185 = vrot.lane.b32.xlu0 %v1920, 92
  %v2186 = vpop.permute.xlu0 %2185
  %v2187 = vsel %vm167, %v2164, %v2166
  %v2188 = vsel %vm167, %v2166, %v2168
  %v2189 = vsel %vm167, %v2168, %v2170
  %v2190 = vsel %vm167, %v2170, %v2172
  %v2191 = vsel %vm167, %v2172, %v2174
  %v2192 = vsel %vm167, %v2176, %v2178
  %v2193 = vsel %vm167, %v2178, %v2180
  %v2194 = vsel %vm167, %v2180, %v2182
  %v2195 = vsel %vm167, %v2182, %v2184
  %v2196 = vsel %vm167, %v2184, %v2186
  %2209 = vrot.lane.b32.xlu0 %v1909, 91
  %v2210 = vpop.permute.xlu0 %2209
  %2211 = vrot.lane.b32.xlu0 %v1910, 91
  %v2212 = vpop.permute.xlu0 %2211
  %2213 = vrot.lane.b32.xlu0 %v1911, 91
  %v2214 = vpop.permute.xlu0 %2213
  %2215 = vrot.lane.b32.xlu0 %v1912, 91
  %v2216 = vpop.permute.xlu0 %2215
  %2217 = vrot.lane.b32.xlu0 %v1913, 91
  %v2218 = vpop.permute.xlu0 %2217
  %2219 = vrot.lane.b32.xlu0 %v1914, 91
  %v2220 = vpop.permute.xlu0 %2219
  %2221 = vrot.lane.b32.xlu0 %v1915, 91
  %v2222 = vpop.permute.xlu0 %2221
  %2223 = vrot.lane.b32.xlu0 %v1916, 91
  %v2224 = vpop.permute.xlu0 %2223
  %2225 = vrot.lane.b32.xlu0 %v1917, 91
  %v2226 = vpop.permute.xlu0 %2225
  %2227 = vrot.lane.b32.xlu0 %v1918, 91
  %v2228 = vpop.permute.xlu0 %2227
  %2229 = vrot.lane.b32.xlu0 %v1919, 91
  %v2230 = vpop.permute.xlu0 %2229
  %2231 = vrot.lane.b32.xlu0 %v1920, 91
  %v2232 = vpop.permute.xlu0 %2231
  %v2233 = vsel %vm185, %v2210, %v2212
  %v2234 = vsel %vm185, %v2212, %v2214
  %v2235 = vsel %vm185, %v2214, %v2216
  %v2236 = vsel %vm185, %v2216, %v2218
  %v2237 = vsel %vm185, %v2218, %v2220
  %v2238 = vsel %vm185, %v2222, %v2224
  %v2239 = vsel %vm185, %v2224, %v2226
  %v2240 = vsel %vm185, %v2226, %v2228
  %v2241 = vsel %vm185, %v2228, %v2230
  %v2242 = vsel %vm185, %v2230, %v2232
  %2255 = vrot.lane.b32.xlu0 %v1909, 90
  %v2256 = vpop.permute.xlu0 %2255
  %2257 = vrot.lane.b32.xlu0 %v1910, 90
  %v2258 = vpop.permute.xlu0 %2257
  %2259 = vrot.lane.b32.xlu0 %v1911, 90
  %v2260 = vpop.permute.xlu0 %2259
  %2261 = vrot.lane.b32.xlu0 %v1912, 90
  %v2262 = vpop.permute.xlu0 %2261
  %2263 = vrot.lane.b32.xlu0 %v1913, 90
  %v2264 = vpop.permute.xlu0 %2263
  %2265 = vrot.lane.b32.xlu0 %v1914, 90
  %v2266 = vpop.permute.xlu0 %2265
  %2267 = vrot.lane.b32.xlu0 %v1915, 90
  %v2268 = vpop.permute.xlu0 %2267
  %2269 = vrot.lane.b32.xlu0 %v1916, 90
  %v2270 = vpop.permute.xlu0 %2269
  %2271 = vrot.lane.b32.xlu0 %v1917, 90
  %v2272 = vpop.permute.xlu0 %2271
  %2273 = vrot.lane.b32.xlu0 %v1918, 90
  %v2274 = vpop.permute.xlu0 %2273
  %2275 = vrot.lane.b32.xlu0 %v1919, 90
  %v2276 = vpop.permute.xlu0 %2275
  %2277 = vrot.lane.b32.xlu0 %v1920, 90
  %v2278 = vpop.permute.xlu0 %2277
  %v2279 = vsel %vm203, %v2256, %v2258
  %v2280 = vsel %vm203, %v2258, %v2260
  %v2281 = vsel %vm203, %v2260, %v2262
  %v2282 = vsel %vm203, %v2262, %v2264
  %v2283 = vsel %vm203, %v2264, %v2266
  %v2284 = vsel %vm203, %v2268, %v2270
  %v2285 = vsel %vm203, %v2270, %v2272
  %v2286 = vsel %vm203, %v2272, %v2274
  %v2287 = vsel %vm203, %v2274, %v2276
  %v2288 = vsel %vm203, %v2276, %v2278
  %v2309 = vunpack.c.l.b16 %v1853
  %v2310 = vunpack.c.h.b16 %v1853
  %v2311 = vunpack.c.l.b16 %v1854
  %v2312 = vunpack.c.l.b16 %v1855
  %v2313 = vunpack.c.h.b16 %v1855
  %v2314 = vunpack.c.l.b16 %v1856
  %v2315 = vunpack.c.l.b16 %v1857
  %v2316 = vunpack.c.h.b16 %v1857
  %v2317 = vunpack.c.l.b16 %v1858
  %v2318 = vunpack.c.l.b16 %v1859
  %v2319 = vunpack.c.h.b16 %v1859
  %v2320 = vunpack.c.l.b16 %v1860
  %v2321 = vpack.c.b16 %v2312, %v2309
  %v2322 = vpack.c.b16 %v2313, %v2310
  %v2323 = vpack.c.b16 %v2314, %v2311
  %v2324 = vpack.c.b16 %v2318, %v2315
  %v2325 = vpack.c.b16 %v2319, %v2316
  %v2326 = vpack.c.b16 %v2320, %v2317
  %v2332 = vsel %vm1316, %v2323, 0
  %v2335 = vsel %vm1316, %v2326, 0
  %2337 = vmatpush.bf16.msra.mxu0 %v2054
  %2338 = vmatpush.bf16.msra.mxu0 %v2049
  %2339 = vmatpush.bf16.msra.mxu0 %v2008
  %2340 = vmatpush.bf16.msra.mxu0 %v2003
  %2341 = vmatpush.bf16.msra.mxu0 %v1962
  %2342 = vmatpush.bf16.msra.mxu0 %v1957
  %2343 = vmatpush.bf16.msra.mxu0 %v1915
  %2344 = vmatpush.bf16.msra.mxu0 %v1909
  %2345 = vmatmul.bf16.gmra.mxu0 %v2321
  %v2346 = vpop.f32.mrf.mxu0
  %v2347 = vadd.f32 %v385, %v2346
  %v2348 = vpop.f32.mrf.mxu0
  %v2349 = vadd.f32 %v387, %v2348
  %2350 = vmatmul.bf16.gmra.mxu0 %v2324
  %v2351 = vpop.f32.mrf.mxu0
  %v2352 = vadd.f32 %v390, %v2351
  %v2353 = vpop.f32.mrf.mxu0
  %v2354 = vadd.f32 %v392, %v2353
  %2355 = vdwg.mxu0
  %2356 = vmatpush.bf16.msra.mxu0 %v2238
  %2357 = vmatpush.bf16.msra.mxu0 %v2233
  %2358 = vmatpush.bf16.msra.mxu0 %v2192
  %2359 = vmatpush.bf16.msra.mxu0 %v2187
  %2360 = vmatpush.bf16.msra.mxu0 %v2146
  %2361 = vmatpush.bf16.msra.mxu0 %v2141
  %2362 = vmatpush.bf16.msra.mxu0 %v2100
  %2363 = vmatpush.bf16.msra.mxu0 %v2095
  %2364 = vmatmul.bf16.gmra.mxu0 %v2322
  %v2365 = vpop.f32.mrf.mxu0
  %v2366 = vadd.f32 %v2347, %v2365
  %v2367 = vpop.f32.mrf.mxu0
  %v2368 = vadd.f32 %v2349, %v2367
  %2369 = vmatmul.bf16.gmra.mxu0 %v2325
  %v2370 = vpop.f32.mrf.mxu0
  %v2371 = vadd.f32 %v2352, %v2370
  %v2372 = vpop.f32.mrf.mxu0
  %v2373 = vadd.f32 %v2354, %v2372
  %2374 = vdwg.mxu0
  %2375 = vmatpush.bf16.msra.mxu0 0
  %2376 = vmatpush.bf16.msra.mxu0 0
  %2377 = vmatpush.bf16.msra.mxu0 0
  %2378 = vmatpush.bf16.msra.mxu0 0
  %2379 = vmatpush.bf16.msra.mxu0 0
  %2380 = vmatpush.bf16.msra.mxu0 0
  %2381 = vmatpush.bf16.msra.mxu0 %v2284
  %2382 = vmatpush.bf16.msra.mxu0 %v2279
  %2383 = vmatmul.bf16.gmra.mxu0 %v2332
  %v2384 = vpop.f32.mrf.mxu0
  %v2385 = vadd.f32 %v2366, %v2384
  %v2386 = vpop.f32.mrf.mxu0
  %v2387 = vadd.f32 %v2368, %v2386
  %2388 = vmatmul.bf16.gmra.mxu0 %v2335
  %v2389 = vpop.f32.mrf.mxu0
  %v2390 = vadd.f32 %v2371, %v2389
  %v2391 = vpop.f32.mrf.mxu0
  %v2392 = vadd.f32 %v2373, %v2391
  %2393 = vdwg.mxu0
  %2394 = vmatpush.bf16.msra.mxu0 %v2055
  %2395 = vmatpush.bf16.msra.mxu0 %v2050
  %2396 = vmatpush.bf16.msra.mxu0 %v2009
  %2397 = vmatpush.bf16.msra.mxu0 %v2004
  %2398 = vmatpush.bf16.msra.mxu0 %v1963
  %2399 = vmatpush.bf16.msra.mxu0 %v1958
  %2400 = vmatpush.bf16.msra.mxu0 %v1916
  %2401 = vmatpush.bf16.msra.mxu0 %v1910
  %2402 = vmatmul.bf16.gmra.mxu0 %v2321
  %v2403 = vpop.f32.mrf.mxu0
  %v2404 = vadd.f32 %v414, %v2403
  %v2405 = vpop.f32.mrf.mxu0
  %v2406 = vadd.f32 %v416, %v2405
  %2407 = vmatmul.bf16.gmra.mxu0 %v2324
  %v2408 = vpop.f32.mrf.mxu0
  %v2409 = vadd.f32 %v419, %v2408
  %v2410 = vpop.f32.mrf.mxu0
  %v2411 = vadd.f32 %v421, %v2410
  %2412 = vdwg.mxu0
  %2413 = vmatpush.bf16.msra.mxu0 %v2239
  %2414 = vmatpush.bf16.msra.mxu0 %v2234
  %2415 = vmatpush.bf16.msra.mxu0 %v2193
  %2416 = vmatpush.bf16.msra.mxu0 %v2188
  %2417 = vmatpush.bf16.msra.mxu0 %v2147
  %2418 = vmatpush.bf16.msra.mxu0 %v2142
  %2419 = vmatpush.bf16.msra.mxu0 %v2101
  %2420 = vmatpush.bf16.msra.mxu0 %v2096
  %2421 = vmatmul.bf16.gmra.mxu0 %v2322
  %v2422 = vpop.f32.mrf.mxu0
  %v2423 = vadd.f32 %v2404, %v2422
  %v2424 = vpop.f32.mrf.mxu0
  %v2425 = vadd.f32 %v2406, %v2424
  %2426 = vmatmul.bf16.gmra.mxu0 %v2325
  %v2427 = vpop.f32.mrf.mxu0
  %v2428 = vadd.f32 %v2409, %v2427
  %v2429 = vpop.f32.mrf.mxu0
  %v2430 = vadd.f32 %v2411, %v2429
  %2431 = vdwg.mxu0
  %2432 = vmatpush.bf16.msra.mxu0 0
  %2433 = vmatpush.bf16.msra.mxu0 0
  %2434 = vmatpush.bf16.msra.mxu0 0
  %2435 = vmatpush.bf16.msra.mxu0 0
  %2436 = vmatpush.bf16.msra.mxu0 0
  %2437 = vmatpush.bf16.msra.mxu0 0
  %2438 = vmatpush.bf16.msra.mxu0 %v2285
  %2439 = vmatpush.bf16.msra.mxu0 %v2280
  %2440 = vmatmul.bf16.gmra.mxu0 %v2332
  %v2441 = vpop.f32.mrf.mxu0
  %v2442 = vadd.f32 %v2423, %v2441
  %v2443 = vpop.f32.mrf.mxu0
  %v2444 = vadd.f32 %v2425, %v2443
  %2445 = vmatmul.bf16.gmra.mxu0 %v2335
  %v2446 = vpop.f32.mrf.mxu0
  %v2447 = vadd.f32 %v2428, %v2446
  %v2448 = vpop.f32.mrf.mxu0
  %v2449 = vadd.f32 %v2430, %v2448
  %2450 = vdwg.mxu0
  %2451 = vmatpush.bf16.msra.mxu0 %v2056
  %2452 = vmatpush.bf16.msra.mxu0 %v2051
  %2453 = vmatpush.bf16.msra.mxu0 %v2010
  %2454 = vmatpush.bf16.msra.mxu0 %v2005
  %2455 = vmatpush.bf16.msra.mxu0 %v1964
  %2456 = vmatpush.bf16.msra.mxu0 %v1959
  %2457 = vmatpush.bf16.msra.mxu0 %v1917
  %2458 = vmatpush.bf16.msra.mxu0 %v1911
  %2459 = vmatmul.bf16.gmra.mxu0 %v2321
  %v2460 = vpop.f32.mrf.mxu0
  %v2461 = vadd.f32 %v443, %v2460
  %v2462 = vpop.f32.mrf.mxu0
  %v2463 = vadd.f32 %v445, %v2462
  %2464 = vmatmul.bf16.gmra.mxu0 %v2324
  %v2465 = vpop.f32.mrf.mxu0
  %v2466 = vadd.f32 %v448, %v2465
  %v2467 = vpop.f32.mrf.mxu0
  %v2468 = vadd.f32 %v450, %v2467
  %2469 = vdwg.mxu0
  %2470 = vmatpush.bf16.msra.mxu0 %v2240
  %2471 = vmatpush.bf16.msra.mxu0 %v2235
  %2472 = vmatpush.bf16.msra.mxu0 %v2194
  %2473 = vmatpush.bf16.msra.mxu0 %v2189
  %2474 = vmatpush.bf16.msra.mxu0 %v2148
  %2475 = vmatpush.bf16.msra.mxu0 %v2143
  %2476 = vmatpush.bf16.msra.mxu0 %v2102
  %2477 = vmatpush.bf16.msra.mxu0 %v2097
  %2478 = vmatmul.bf16.gmra.mxu0 %v2322
  %v2479 = vpop.f32.mrf.mxu0
  %v2480 = vadd.f32 %v2461, %v2479
  %v2481 = vpop.f32.mrf.mxu0
  %v2482 = vadd.f32 %v2463, %v2481
  %2483 = vmatmul.bf16.gmra.mxu0 %v2325
  %v2484 = vpop.f32.mrf.mxu0
  %v2485 = vadd.f32 %v2466, %v2484
  %v2486 = vpop.f32.mrf.mxu0
  %v2487 = vadd.f32 %v2468, %v2486
  %2488 = vdwg.mxu0
  %2489 = vmatpush.bf16.msra.mxu0 0
  %2490 = vmatpush.bf16.msra.mxu0 0
  %2491 = vmatpush.bf16.msra.mxu0 0
  %2492 = vmatpush.bf16.msra.mxu0 0
  %2493 = vmatpush.bf16.msra.mxu0 0
  %2494 = vmatpush.bf16.msra.mxu0 0
  %2495 = vmatpush.bf16.msra.mxu0 %v2286
  %2496 = vmatpush.bf16.msra.mxu0 %v2281
  %2497 = vmatmul.bf16.gmra.mxu0 %v2332
  %v2498 = vpop.f32.mrf.mxu0
  %v2499 = vadd.f32 %v2480, %v2498
  %v2500 = vpop.f32.mrf.mxu0
  %v2501 = vadd.f32 %v2482, %v2500
  %2502 = vmatmul.bf16.gmra.mxu0 %v2335
  %v2503 = vpop.f32.mrf.mxu0
  %v2504 = vadd.f32 %v2485, %v2503
  %v2505 = vpop.f32.mrf.mxu0
  %v2506 = vadd.f32 %v2487, %v2505
  %2507 = vdwg.mxu0
  %2508 = vmatpush.bf16.msra.mxu0 %v2057
  %2509 = vmatpush.bf16.msra.mxu0 %v2052
  %2510 = vmatpush.bf16.msra.mxu0 %v2011
  %2511 = vmatpush.bf16.msra.mxu0 %v2006
  %2512 = vmatpush.bf16.msra.mxu0 %v1965
  %2513 = vmatpush.bf16.msra.mxu0 %v1960
  %2514 = vmatpush.bf16.msra.mxu0 %v1918
  %2515 = vmatpush.bf16.msra.mxu0 %v1912
  %2516 = vmatmul.bf16.gmra.mxu0 %v2321
  %v2517 = vpop.f32.mrf.mxu0
  %v2518 = vadd.f32 %v472, %v2517
  %v2519 = vpop.f32.mrf.mxu0
  %v2520 = vadd.f32 %v474, %v2519
  %2521 = vmatmul.bf16.gmra.mxu0 %v2324
  %v2522 = vpop.f32.mrf.mxu0
  %v2523 = vadd.f32 %v477, %v2522
  %v2524 = vpop.f32.mrf.mxu0
  %v2525 = vadd.f32 %v479, %v2524
  %2526 = vdwg.mxu0
  %2527 = vmatpush.bf16.msra.mxu0 %v2241
  %2528 = vmatpush.bf16.msra.mxu0 %v2236
  %2529 = vmatpush.bf16.msra.mxu0 %v2195
  %2530 = vmatpush.bf16.msra.mxu0 %v2190
  %2531 = vmatpush.bf16.msra.mxu0 %v2149
  %2532 = vmatpush.bf16.msra.mxu0 %v2144
  %2533 = vmatpush.bf16.msra.mxu0 %v2103
  %2534 = vmatpush.bf16.msra.mxu0 %v2098
  %2535 = vmatmul.bf16.gmra.mxu0 %v2322
  %v2536 = vpop.f32.mrf.mxu0
  %v2537 = vadd.f32 %v2518, %v2536
  %v2538 = vpop.f32.mrf.mxu0
  %v2539 = vadd.f32 %v2520, %v2538
  %2540 = vmatmul.bf16.gmra.mxu0 %v2325
  %v2541 = vpop.f32.mrf.mxu0
  %v2542 = vadd.f32 %v2523, %v2541
  %v2543 = vpop.f32.mrf.mxu0
  %v2544 = vadd.f32 %v2525, %v2543
  %2545 = vdwg.mxu0
  %2546 = vmatpush.bf16.msra.mxu0 0
  %2547 = vmatpush.bf16.msra.mxu0 0
  %2548 = vmatpush.bf16.msra.mxu0 0
  %2549 = vmatpush.bf16.msra.mxu0 0
  %2550 = vmatpush.bf16.msra.mxu0 0
  %2551 = vmatpush.bf16.msra.mxu0 0
  %2552 = vmatpush.bf16.msra.mxu0 %v2287
  %2553 = vmatpush.bf16.msra.mxu0 %v2282
  %2554 = vmatmul.bf16.gmra.mxu0 %v2332
  %v2555 = vpop.f32.mrf.mxu0
  %v2556 = vadd.f32 %v2537, %v2555
  %v2557 = vpop.f32.mrf.mxu0
  %v2558 = vadd.f32 %v2539, %v2557
  %2559 = vmatmul.bf16.gmra.mxu0 %v2335
  %v2560 = vpop.f32.mrf.mxu0
  %v2561 = vadd.f32 %v2542, %v2560
  %v2562 = vpop.f32.mrf.mxu0
  %v2563 = vadd.f32 %v2544, %v2562
  %2564 = vdwg.mxu0
  %2565 = vmatpush.bf16.msra.mxu0 %v2058
  %2566 = vmatpush.bf16.msra.mxu0 %v2053
  %2567 = vmatpush.bf16.msra.mxu0 %v2012
  %2568 = vmatpush.bf16.msra.mxu0 %v2007
  %2569 = vmatpush.bf16.msra.mxu0 %v1966
  %2570 = vmatpush.bf16.msra.mxu0 %v1961
  %2571 = vmatpush.bf16.msra.mxu0 %v1919
  %2572 = vmatpush.bf16.msra.mxu0 %v1913
  %2573 = vmatmul.bf16.gmra.mxu0 %v2321
  %v2574 = vpop.f32.mrf.mxu0
  %v2575 = vadd.f32 %v501, %v2574
  %v2576 = vpop.f32.mrf.mxu0
  %v2577 = vadd.f32 %v503, %v2576
  %2578 = vmatmul.bf16.gmra.mxu0 %v2324
  %v2579 = vpop.f32.mrf.mxu0
  %v2580 = vadd.f32 %v506, %v2579
  %v2581 = vpop.f32.mrf.mxu0
  %v2582 = vadd.f32 %v508, %v2581
  %2583 = vdwg.mxu0
  %2584 = vmatpush.bf16.msra.mxu0 %v2242
  %2585 = vmatpush.bf16.msra.mxu0 %v2237
  %2586 = vmatpush.bf16.msra.mxu0 %v2196
  %2587 = vmatpush.bf16.msra.mxu0 %v2191
  %2588 = vmatpush.bf16.msra.mxu0 %v2150
  %2589 = vmatpush.bf16.msra.mxu0 %v2145
  %2590 = vmatpush.bf16.msra.mxu0 %v2104
  %2591 = vmatpush.bf16.msra.mxu0 %v2099
  %2592 = vmatmul.bf16.gmra.mxu0 %v2322
  %v2593 = vpop.f32.mrf.mxu0
  %v2594 = vadd.f32 %v2575, %v2593
  %v2595 = vpop.f32.mrf.mxu0
  %v2596 = vadd.f32 %v2577, %v2595
  %2597 = vmatmul.bf16.gmra.mxu0 %v2325
  %v2598 = vpop.f32.mrf.mxu0
  %v2599 = vadd.f32 %v2580, %v2598
  %v2600 = vpop.f32.mrf.mxu0
  %v2601 = vadd.f32 %v2582, %v2600
  %2602 = vdwg.mxu0
  %2603 = vmatpush.bf16.msra.mxu0 0
  %2604 = vmatpush.bf16.msra.mxu0 0
  %2605 = vmatpush.bf16.msra.mxu0 0
  %2606 = vmatpush.bf16.msra.mxu0 0
  %2607 = vmatpush.bf16.msra.mxu0 0
  %2608 = vmatpush.bf16.msra.mxu0 0
  %2609 = vmatpush.bf16.msra.mxu0 %v2288
  %2610 = vmatpush.bf16.msra.mxu0 %v2283
  %2611 = vmatmul.bf16.gmra.mxu0 %v2332
  %v2612 = vpop.f32.mrf.mxu0
  %v2613 = vadd.f32 %v2594, %v2612
  %v2614 = vpop.f32.mrf.mxu0
  %v2615 = vadd.f32 %v2596, %v2614
  %2616 = vmatmul.bf16.gmra.mxu0 %v2335
  %v2617 = vpop.f32.mrf.mxu0
  %v2618 = vadd.f32 %v2599, %v2617
  %v2619 = vpop.f32.mrf.mxu0
  %v2620 = vadd.f32 %v2601, %v2619
  %2621 = vdwg.mxu0
  %2622 = vmatpush.bf16.msra.mxu0 %v2048
  %2623 = vmatpush.bf16.msra.mxu0 %v2036
  %2624 = vmatpush.bf16.msra.mxu0 %v2002
  %2625 = vmatpush.bf16.msra.mxu0 %v1990
  %2626 = vmatpush.bf16.msra.mxu0 %v1956
  %2627 = vmatpush.bf16.msra.mxu0 %v1944
  %2628 = vmatpush.bf16.msra.mxu0 %v1920
  %2629 = vmatpush.bf16.msra.mxu0 %v1914
  %2630 = vmatmul.bf16.gmra.mxu0 %v2321
  %v2631 = vpop.f32.mrf.mxu0
  %v2632 = vadd.f32 %v530, %v2631
  %v2633 = vpop.f32.mrf.mxu0
  %v2634 = vadd.f32 %v532, %v2633
  %2635 = vmatmul.bf16.gmra.mxu0 %v2324
  %v2636 = vpop.f32.mrf.mxu0
  %v2637 = vadd.f32 %v535, %v2636
  %v2638 = vpop.f32.mrf.mxu0
  %v2639 = vadd.f32 %v537, %v2638
  %2640 = vdwg.mxu0
  %2641 = vmatpush.bf16.msra.mxu0 %v2232
  %2642 = vmatpush.bf16.msra.mxu0 %v2220
  %2643 = vmatpush.bf16.msra.mxu0 %v2186
  %2644 = vmatpush.bf16.msra.mxu0 %v2174
  %2645 = vmatpush.bf16.msra.mxu0 %v2140
  %2646 = vmatpush.bf16.msra.mxu0 %v2128
  %2647 = vmatpush.bf16.msra.mxu0 %v2094
  %2648 = vmatpush.bf16.msra.mxu0 %v2082
  %2649 = vmatmul.bf16.gmra.mxu0 %v2322
  %v2650 = vpop.f32.mrf.mxu0
  %v2651 = vadd.f32 %v2632, %v2650
  %v2652 = vpop.f32.mrf.mxu0
  %v2653 = vadd.f32 %v2634, %v2652
  %2654 = vmatmul.bf16.gmra.mxu0 %v2325
  %v2655 = vpop.f32.mrf.mxu0
  %v2656 = vadd.f32 %v2637, %v2655
  %v2657 = vpop.f32.mrf.mxu0
  %v2658 = vadd.f32 %v2639, %v2657
  %2659 = vdwg.mxu0
  %2660 = vmatpush.bf16.msra.mxu0 0
  %2661 = vmatpush.bf16.msra.mxu0 0
  %2662 = vmatpush.bf16.msra.mxu0 0
  %2663 = vmatpush.bf16.msra.mxu0 0
  %2664 = vmatpush.bf16.msra.mxu0 0
  %2665 = vmatpush.bf16.msra.mxu0 0
  %2666 = vmatpush.bf16.msra.mxu0 %v2278
  %2667 = vmatpush.bf16.msra.mxu0 %v2266
  %2668 = vmatmul.bf16.gmra.mxu0 %v2332
  %v2669 = vpop.f32.mrf.mxu0
  %v2670 = vadd.f32 %v2651, %v2669
  %v2671 = vpop.f32.mrf.mxu0
  %v2672 = vadd.f32 %v2653, %v2671
  %2673 = vmatmul.bf16.gmra.mxu0 %v2335
  %v2674 = vpop.f32.mrf.mxu0
  %v2675 = vadd.f32 %v2656, %v2674
  %v2676 = vpop.f32.mrf.mxu0
  %v2677 = vadd.f32 %v2658, %v2676
  %2678 = vdwg.mxu0
  %v2679 = vld [vmem:[%s7] sm:$0xff]
  %v2680 = vld [vmem:[%s7 + $0x8] sm:$0xff]
  %v2681 = vld [vmem:[%s7 + $0x10] sm:$0xff]
  %v2682 = vld [vmem:[%s7 + $0x18] sm:$0xff]
  %2684 = vset.pattern.permute.xlu0 0
  %2685 = vperm.xlu0 %2684, %v2679
  %v2686 = vpop.permute.xlu0 %2685
  %2689 = vset.pattern.permute.xlu0 0
  %2690 = vperm.xlu0 %2689, %v2680
  %v2691 = vpop.permute.xlu0 %2690
  %2694 = vset.pattern.permute.xlu0 0
  %2695 = vperm.xlu0 %2694, %v2681
  %v2696 = vpop.permute.xlu0 %2695
  %2699 = vset.pattern.permute.xlu0 0
  %2700 = vperm.xlu0 %2699, %v2682
  %v2701 = vpop.permute.xlu0 %2700
  %v2703 = vadd.f32 %v2385, %v2686
  %v2704 = vadd.f32 %v2442, %v2686
  %v2705 = vadd.f32 %v2499, %v2686
  %v2706 = vadd.f32 %v2556, %v2686
  %v2707 = vadd.f32 %v2613, %v2686
  %v2708 = vadd.f32 %v2670, %v2686
  %v2709 = vadd.f32 %v2387, %v2691
  %v2710 = vadd.f32 %v2444, %v2691
  %v2711 = vadd.f32 %v2501, %v2691
  %v2712 = vadd.f32 %v2558, %v2691
  %v2713 = vadd.f32 %v2615, %v2691
  %v2714 = vadd.f32 %v2672, %v2691
  %v2715 = vadd.f32 %v2390, %v2696
  %v2716 = vadd.f32 %v2447, %v2696
  %v2717 = vadd.f32 %v2504, %v2696
  %v2718 = vadd.f32 %v2561, %v2696
  %v2719 = vadd.f32 %v2618, %v2696
  %v2720 = vadd.f32 %v2675, %v2696
  %v2721 = vadd.f32 %v2392, %v2701
  %v2722 = vadd.f32 %v2449, %v2701
  %v2723 = vadd.f32 %v2506, %v2701
  %v2724 = vadd.f32 %v2563, %v2701
  %v2725 = vadd.f32 %v2620, %v2701
  %v2726 = vadd.f32 %v2677, %v2701
  %v2727 = vmax.f32 %v2703, 0.0
  %v2728 = vmax.f32 %v2704, 0.0
  %v2729 = vmax.f32 %v2705, 0.0
  %v2730 = vmax.f32 %v2706, 0.0
  %v2731 = vmax.f32 %v2707, 0.0
  %v2732 = vmax.f32 %v2708, 0.0
  %v2733 = vmax.f32 %v2709, 0.0
  %v2734 = vmax.f32 %v2710, 0.0
  %v2735 = vmax.f32 %v2711, 0.0
  %v2736 = vmax.f32 %v2712, 0.0
  %v2737 = vmax.f32 %v2713, 0.0
  %v2738 = vmax.f32 %v2714, 0.0
  %v2739 = vmax.f32 %v2715, 0.0
  %v2740 = vmax.f32 %v2716, 0.0
  %v2741 = vmax.f32 %v2717, 0.0
  %v2742 = vmax.f32 %v2718, 0.0
  %v2743 = vmax.f32 %v2719, 0.0
  %v2744 = vmax.f32 %v2720, 0.0
  %v2745 = vmax.f32 %v2721, 0.0
  %v2746 = vmax.f32 %v2722, 0.0
  %v2747 = vmax.f32 %v2723, 0.0
  %v2748 = vmax.f32 %v2724, 0.0
  %v2749 = vmax.f32 %v2725, 0.0
  %v2750 = vmax.f32 %v2726, 0.0
  %v2751 = vpack.c.bf16 %v2733, %v2727
  %v2752 = vpack.c.bf16 %v2734, %v2728
  %v2753 = vpack.c.bf16 %v2735, %v2729
  %v2754 = vpack.c.bf16 %v2736, %v2730
  %v2755 = vpack.c.bf16 %v2737, %v2731
  %v2756 = vpack.c.bf16 %v2738, %v2732
  %v2757 = vpack.c.bf16 %v2745, %v2739
  %v2758 = vpack.c.bf16 %v2746, %v2740
  %v2759 = vpack.c.bf16 %v2747, %v2741
  %v2760 = vpack.c.bf16 %v2748, %v2742
  %v2761 = vpack.c.bf16 %v2749, %v2743
  %v2762 = vpack.c.bf16 %v2750, %v2744
  %v2763 = vld [vmem:[%s8] sm:$0xf]
  %v2764 = vld [vmem:[%s9] sm:$0xff]
  %2766 = vset.pattern.permute.xlu0 0
  %2767 = vperm.xlu0 %2766, %v2764
  %v2768 = vpop.permute.xlu0 %2767
  %v2771 = vsel %vm1316, %v2763, 0
  %2773 = vmatpush.bf16.msra.mxu0 0
  %2774 = vmatpush.bf16.msra.mxu0 0
  %2775 = vmatpush.bf16.msra.mxu0 0
  %2776 = vmatpush.bf16.msra.mxu0 0
  %2777 = vmatpush.bf16.msra.mxu0 0
  %2778 = vmatpush.bf16.msra.mxu0 0
  %2779 = vmatpush.bf16.msra.mxu0 %v2757
  %2780 = vmatpush.bf16.msra.mxu0 %v2751
  %2781 = vmatmul.bf16.gmra.mxu0 %v2771
  %v2782 = vpop.f32.mrf.mxu0
  %v2783 = vadd.f32 %v2768, %v2782
  %v2784 = vpop.f32.mrf.mxu0
  %2785 = vdwg.mxu0
  %2786 = vmatpush.bf16.msra.mxu0 0
  %2787 = vmatpush.bf16.msra.mxu0 0
  %2788 = vmatpush.bf16.msra.mxu0 0
  %2789 = vmatpush.bf16.msra.mxu0 0
  %2790 = vmatpush.bf16.msra.mxu0 0
  %2791 = vmatpush.bf16.msra.mxu0 0
  %2792 = vmatpush.bf16.msra.mxu0 %v2758
  %2793 = vmatpush.bf16.msra.mxu0 %v2752
  %2794 = vmatmul.bf16.gmra.mxu0 %v2771
  %v2795 = vpop.f32.mrf.mxu0
  %v2796 = vadd.f32 %v2768, %v2795
  %v2797 = vpop.f32.mrf.mxu0
  %2798 = vdwg.mxu0
  %2799 = vmatpush.bf16.msra.mxu0 0
  %2800 = vmatpush.bf16.msra.mxu0 0
  %2801 = vmatpush.bf16.msra.mxu0 0
  %2802 = vmatpush.bf16.msra.mxu0 0
  %2803 = vmatpush.bf16.msra.mxu0 0
  %2804 = vmatpush.bf16.msra.mxu0 0
  %2805 = vmatpush.bf16.msra.mxu0 %v2759
  %2806 = vmatpush.bf16.msra.mxu0 %v2753
  %2807 = vmatmul.bf16.gmra.mxu0 %v2771
  %v2808 = vpop.f32.mrf.mxu0
  %v2809 = vadd.f32 %v2768, %v2808
  %v2810 = vpop.f32.mrf.mxu0
  %2811 = vdwg.mxu0
  %2812 = vmatpush.bf16.msra.mxu0 0
  %2813 = vmatpush.bf16.msra.mxu0 0
  %2814 = vmatpush.bf16.msra.mxu0 0
  %2815 = vmatpush.bf16.msra.mxu0 0
  %2816 = vmatpush.bf16.msra.mxu0 0
  %2817 = vmatpush.bf16.msra.mxu0 0
  %2818 = vmatpush.bf16.msra.mxu0 %v2760
  %2819 = vmatpush.bf16.msra.mxu0 %v2754
  %2820 = vmatmul.bf16.gmra.mxu0 %v2771
  %v2821 = vpop.f32.mrf.mxu0
  %v2822 = vadd.f32 %v2768, %v2821
  %v2823 = vpop.f32.mrf.mxu0
  %2824 = vdwg.mxu0
  %2825 = vmatpush.bf16.msra.mxu0 0
  %2826 = vmatpush.bf16.msra.mxu0 0
  %2827 = vmatpush.bf16.msra.mxu0 0
  %2828 = vmatpush.bf16.msra.mxu0 0
  %2829 = vmatpush.bf16.msra.mxu0 0
  %2830 = vmatpush.bf16.msra.mxu0 0
  %2831 = vmatpush.bf16.msra.mxu0 %v2761
  %2832 = vmatpush.bf16.msra.mxu0 %v2755
  %2833 = vmatmul.bf16.gmra.mxu0 %v2771
  %v2834 = vpop.f32.mrf.mxu0
  %v2835 = vadd.f32 %v2768, %v2834
  %v2836 = vpop.f32.mrf.mxu0
  %2837 = vdwg.mxu0
  %2838 = vmatpush.bf16.msra.mxu0 0
  %2839 = vmatpush.bf16.msra.mxu0 0
  %2840 = vmatpush.bf16.msra.mxu0 0
  %2841 = vmatpush.bf16.msra.mxu0 0
  %2842 = vmatpush.bf16.msra.mxu0 0
  %2843 = vmatpush.bf16.msra.mxu0 0
  %2844 = vmatpush.bf16.msra.mxu0 %v2762
  %2845 = vmatpush.bf16.msra.mxu0 %v2756
  %2846 = vmatmul.bf16.gmra.mxu0 %v2771
  %v2847 = vpop.f32.mrf.mxu0
  %v2848 = vadd.f32 %v2768, %v2847
  %v2849 = vpop.f32.mrf.mxu0
  %2850 = vdwg.mxu0
  %vm2851 = vcmask 556032
  %v2852 = vsel %vm2851, %v2848, 0.0
  %2853 = vst [vmem:[%s10] sm:$0xff] %v2783
  %2854 = vst [vmem:[%s10 + $0x8] sm:$0xff] %v2796
  %2855 = vst [vmem:[%s10 + $0x10] sm:$0xff] %v2809
  %2856 = vst [vmem:[%s10 + $0x18] sm:$0xff] %v2822
  %2857 = vst [vmem:[%s10 + $0x20] sm:$0xff] %v2835
  %2858 = vst [vmem:[%s10 + $0x28] sm:$0xff] %v2852
  // Predicated region
  $region42: #{fcn_head_forward.1} parent=0 // pred_check
    _
  $region43: #{fcn_head_forward.1} parent=0 // pred_check_branch
    %2860 = sbr.rel (0) target = $region45
  $region44: #{fcn_head_forward.1} parent=0 // pred_region
    _
  $region45: #{fcn_head_forward.1} parent=0 // pred_fallthru
    _
  // Predicated region
  $region46: #{fcn_head_forward.1} parent=0 // pred_check
    _
  $region47: #{fcn_head_forward.1} parent=0 // pred_check_branch
    %2862 = sbr.rel (0) target = $region49
  $region48: #{fcn_head_forward.1} parent=0 // pred_region
    _
  $region49: #{fcn_head_forward.1} parent=0 // pred_fallthru
    _

</llo_original>
